<compile_context>
chip_gen: v7x
topology: tpu7x:2x2x1
jax: 0.10.0
libtpu: 0.0.40
codegen_flags: <defaults>
</compile_context>

<pallas_src>
import jax
import jax.numpy as jnp
from jax.experimental import pallas as pl
from jax.experimental.pallas import tpu as pltpu

LANE = 128
KH = 3  # conv kernel height


# ----------------------------------------------------------------------------
# Fused Pallas kernel: conv3x3(pad=1) + bias + ReLU + Linear (h-accumulated)
# ----------------------------------------------------------------------------
def nec_fused_kernel(lhs_ref, cw_ref, cb_ref, fw_ref, fb_ref, o_ref):
    # lhs_ref : (H*B, KH*Kp)     bf16  shifted/padded NHWC input rows, (h, b)-major
    # cw_ref  : (KH*Kp, W*Cout)  bf16  banded conv weights (kh bands concatenated)
    # cb_ref  : (1, W*Cout)      f32   conv bias tiled over w
    # fw_ref  : (H, E, W*Cout)   bf16  FC weights, minor dim lane-dense
    # fb_ref  : (1, E)           f32
    # o_ref   : (B, E)           f32
    H, E, _ = fw_ref.shape
    HB = lhs_ref.shape[0]
    B = HB // H

    # ---- conv as a single batched matmul (bf16 in, f32 accumulate) ----
    conv = jnp.dot(lhs_ref[...], cw_ref[...],
                   preferred_element_type=jnp.float32)          # (H*B, W*Cout)
    act = jnp.maximum(conv + cb_ref[...], 0.0).astype(jnp.bfloat16)

    # ---- fully-connected head: accumulate over h (kills the flatten scratch) ----
    acc = jnp.zeros((B, E), jnp.float32)
    for h in range(H):                                          # trace-time unroll
        a_h = act[h * B:(h + 1) * B, :]                         # (B, W*Cout) bf16
        w_t = fw_ref[h].T                                       # (W*Cout, E) bf16
        acc = acc + jnp.dot(a_h, w_t, preferred_element_type=jnp.float32)
    o_ref[...] = acc + fb_ref[...]


# ----------------------------------------------------------------------------
# One-time parameter preparation (init-time only — NOT in the per-call path)
# ----------------------------------------------------------------------------
def prepare_params(params, *, H=16, W=16):
    conv_w = params["conv_w"]          # (Cout, Cin, 3, 3)
    conv_b = params["conv_b"]          # (Cout,)
    fc_w = params["fc_w"]              # (Cout*H*W, E), torch NCHW-flatten row order
    fc_b = params["fc_b"]              # (E,)

    Cout, C, _, KW = conv_w.shape
    E = fc_w.shape[1]
    Hp, Wp = H + 2, W + 2
    WCout = W * Cout                                   # 128 -> lane-dense conv output
    Kp = pl.cdiv(Wp * C, LANE) * LANE                  # per-band contraction padded

    # ---- conv weights as KH banded (Kp, W*Cout) matrices, concatenated:
    #      band[kh, w_in*C + c, w_out*Cout + co] = conv_w[co, c, kh, w_in - w_out]
    wgt = jnp.transpose(conv_w, (2, 3, 1, 0))                  # (kh, kw, C, Cout)
    w_in = jnp.arange(Wp)[:, None]
    w_out = jnp.arange(W)[None, :]
    kw_idx = w_in - w_out                                      # (Wp, W)
    valid = ((kw_idx >= 0) & (kw_idx <= KW - 1)).astype(wgt.dtype)
    band = wgt[:, jnp.clip(kw_idx, 0, KW - 1)]                 # (KH, Wp, W, C, Cout)
    band = band * valid[None, :, :, None, None]
    band = jnp.transpose(band, (0, 1, 3, 2, 4)).reshape(KH, Wp * C, WCout)
    band = jnp.pad(band, ((0, 0), (0, Kp - Wp * C), (0, 0)))   # (KH, Kp, WCout)
    cw = band.reshape(KH * Kp, WCout).astype(jnp.bfloat16)     # (KH*Kp, WCout)

    cb = jnp.tile(conv_b, W).reshape(1, WCout).astype(jnp.float32)

    # ---- FC weights: torch row co*H*W + h*W + w  ->  fw[h, e, w*Cout + co]
    #      (E is the second-minor dim so the HBM/VMEM layout stays dense)
    fw = fc_w.reshape(Cout, H, W, E)                           # [co, h, w, e]
    fw = jnp.transpose(fw, (1, 3, 2, 0)).reshape(H, E, WCout)  # [h, e, w*Cout+co]
    fw = fw.astype(jnp.bfloat16)
    fb = fc_b.reshape(1, E).astype(jnp.float32)

    return {"cw": cw, "cb": cb, "fw": fw, "fb": fb}


# ----------------------------------------------------------------------------
# Per-call wrapper: only cheap re-layout of the (tiny) input, then one pallas_call
# ----------------------------------------------------------------------------
def nec_forward(obs, prepped):
    """NEC.forward: cnn_embed = self.cnn(obs).  obs: [B, C, H, W] (NCHW)."""
    cw, cb, fw, fb = prepped["cw"], prepped["cb"], prepped["fw"], prepped["fb"]

    B, C, H, W = obs.shape
    Hp = H + 2
    Kp = cw.shape[0] // KH
    WCout = cw.shape[1]
    E = fb.shape[1]

    # NCHW -> NHWC, zero-pad spatially, merge (w, c) into lanes, pad lanes to Kp
    x = jnp.transpose(obs, (0, 2, 3, 1))                       # (B, H, W, C)
    xp = jnp.pad(x, ((0, 0), (1, 1), (1, 1), (0, 0)))          # (B, Hp, Wp, C)
    xp = xp.reshape(B, Hp, (W + 2) * C)
    xp = jnp.pad(xp, ((0, 0), (0, 0), (0, Kp - (W + 2) * C)))  # (B, Hp, Kp)

    # Build the batched conv LHS: rows ordered (h, b), lanes = (kh, w_in, c)
    lhs = jnp.concatenate([xp[:, kh:kh + H, :] for kh in range(KH)],
                          axis=-1)                             # (B, H, KH*Kp)
    lhs = jnp.transpose(lhs, (1, 0, 2)).reshape(H * B, KH * Kp)
    lhs = lhs.astype(jnp.bfloat16)

    out = pl.pallas_call(
        nec_fused_kernel,
        out_shape=jax.ShapeDtypeStruct((B, E), jnp.float32),
        grid_spec=pltpu.PrefetchScalarGridSpec(
            num_scalar_prefetch=0,
            grid=(1,),
            in_specs=[
                pl.BlockSpec((H * B, KH * Kp), lambda i: (0, 0)),
                pl.BlockSpec((KH * Kp, WCout), lambda i: (0, 0)),
                pl.BlockSpec((1, WCout), lambda i: (0, 0)),
                pl.BlockSpec((H, E, WCout), lambda i: (0, 0, 0)),
                pl.BlockSpec((1, E), lambda i: (0, 0)),
            ],
            out_specs=pl.BlockSpec((B, E), lambda i: (0, 0)),
        ),
        compiler_params=pltpu.CompilerParams(
            dimension_semantics=("arbitrary",),
        ),
    )(lhs, cw, cb, fw, fb)

    return out


# ----------------------------------------------------------------------------
# Pure-JAX reference (loose numerical sanity check; kernel uses bf16 operands)
# ----------------------------------------------------------------------------
def nec_reference(obs, params):
    y = jax.lax.conv_general_dilated(
        obs, params["conv_w"], window_strides=(1, 1),
        padding=((1, 1), (1, 1)),
        dimension_numbers=("NCHW", "OIHW", "NCHW"))
    y = jnp.maximum(y + params["conv_b"][None, :, None, None], 0.0)
    flat = y.reshape(y.shape[0], -1)                 # NCHW flatten, like torch
    return flat @ params["fc_w"] + params["fc_b"]


# ----------------------------------------------------------------------------
if __name__ == "__main__":
    B, C, H, W = 2, 4, 16, 16
    COUT, EMBED = 8, 32

    key = jax.random.PRNGKey(0)
    k_obs, k_cw, k_cb, k_fw, k_fb = jax.random.split(key, 5)

    obs = jax.random.normal(k_obs, (B, C, H, W), dtype=jnp.float32)
    params = {
        "conv_w": 0.1 * jax.random.normal(k_cw, (COUT, C, 3, 3), jnp.float32),
        "conv_b": 0.1 * jax.random.normal(k_cb, (COUT,), jnp.float32),
        "fc_w":   0.05 * jax.random.normal(k_fw, (COUT * H * W, EMBED), jnp.float32),
        "fc_b":   0.05 * jax.random.normal(k_fb, (EMBED,), jnp.float32),
    }

    # Weight re-layout happens exactly once at init.
    prepped = prepare_params(params, H=H, W=W)
    prepped = jax.tree_util.tree_map(jax.block_until_ready, prepped)

    fwd = jax.jit(nec_forward)
    cnn_embed = fwd(obs, prepped)
    jax.block_until_ready(cnn_embed)
    assert cnn_embed.shape == (B, EMBED)

    # Loose tolerance: conv + FC matmul operands are bf16 (f32 accumulation).
    ref = nec_reference(obs, params)
    max_err = float(jnp.max(jnp.abs(cnn_embed - ref)))
    assert max_err < 5e-2, f"max abs error vs reference: {max_err}"

    print("KERNEL_OK")
</pallas_src>

<mosaic_0001>
module attributes {stable_mosaic.version = 11 : i64} {
  func.func @nec_fused_kernel(%arg0: i32, %arg1: memref<32x384xbf16, #tpu.memory_space<vmem>>, %arg2: memref<384x128xbf16, #tpu.memory_space<vmem>>, %arg3: memref<1x128xf32, #tpu.memory_space<vmem>>, %arg4: memref<16x32x128xbf16, #tpu.memory_space<vmem>>, %arg5: memref<1x32xf32, #tpu.memory_space<vmem>>, %arg6: memref<2x32xf32, #tpu.memory_space<vmem>>) attributes {dimension_semantics = [#tpu.dimension_semantics<arbitrary>], iteration_bounds = array<i64: 1>, scalar_prefetch = 0 : i64, scratch_operands = 0 : i64, tpu.core_type = #tpu.core_type<tc>, window_params = [{pipeline_mode = #tpu.pipeline_mode<synchronous>, transform_indices = @transform_0, window_bounds = array<i64: 32, 384>}, {pipeline_mode = #tpu.pipeline_mode<synchronous>, transform_indices = @transform_1, window_bounds = array<i64: 384, 128>}, {pipeline_mode = #tpu.pipeline_mode<synchronous>, transform_indices = @transform_2, window_bounds = array<i64: 1, 128>}, {pipeline_mode = #tpu.pipeline_mode<synchronous>, transform_indices = @transform_3, window_bounds = array<i64: 16, 32, 128>}, {pipeline_mode = #tpu.pipeline_mode<synchronous>, transform_indices = @transform_4, window_bounds = array<i64: 1, 32>}, {pipeline_mode = #tpu.pipeline_mode<synchronous>, transform_indices = @transform_5, window_bounds = array<i64: 2, 32>}]} {
    %c0 = arith.constant 0 : index
    %c0_0 = arith.constant 0 : index
    %0 = vector.load %arg1[%c0, %c0_0] : memref<32x384xbf16, #tpu.memory_space<vmem>>, vector<32x384xbf16>
    %c0_1 = arith.constant 0 : index
    %c0_2 = arith.constant 0 : index
    %1 = vector.load %arg2[%c0_1, %c0_2] : memref<384x128xbf16, #tpu.memory_space<vmem>>, vector<384x128xbf16>
    %cst = arith.constant dense<0.000000e+00> : vector<32x128xf32>
    %2 = tpu.matmul %0, %1, %cst {dimension_numbers = #tpu.dot_dimension_numbers<[1], [0], [0], [1], [0, 0, 1, 1], [], []>} : vector<32x384xbf16>, vector<384x128xbf16>, vector<32x128xf32> -> vector<32x128xf32>
    %c0_3 = arith.constant 0 : index
    %c0_4 = arith.constant 0 : index
    %3 = vector.load %arg3[%c0_3, %c0_4] : memref<1x128xf32, #tpu.memory_space<vmem>>, vector<1x128xf32>
    %4 = vector.broadcast %3 : vector<1x128xf32> to vector<32x128xf32>
    %5 = arith.addf %2, %4 : vector<32x128xf32>
    %cst_5 = arith.constant 0.000000e+00 : f32
    %6 = vector.broadcast %cst_5 : f32 to vector<32x128xf32>
    %7 = arith.maximumf %5, %6 : vector<32x128xf32>
    %8 = arith.truncf %7 : vector<32x128xf32> to vector<32x128xbf16>
    %cst_6 = arith.constant 0.000000e+00 : f32
    %9 = vector.broadcast %cst_6 : f32 to vector<2x32xf32>
    %10 = vector.extract_strided_slice %8 {offsets = [0, 0], sizes = [2, 128], strides = [1, 1]} : vector<32x128xbf16> to vector<2x128xbf16>
    %c0_7 = arith.constant 0 : index
    %c0_8 = arith.constant 0 : index
    %c0_9 = arith.constant 0 : index
    %11 = vector.load %arg4[%c0_7, %c0_8, %c0_9] : memref<16x32x128xbf16, #tpu.memory_space<vmem>>, vector<1x32x128xbf16>
    %12 = vector.shape_cast %11 : vector<1x32x128xbf16> to vector<32x128xbf16>
    %13 = tpu.transpose %12, [1, 0] : vector<32x128xbf16> -> vector<128x32xbf16>
    %cst_10 = arith.constant dense<0.000000e+00> : vector<2x32xf32>
    %14 = tpu.matmul %10, %13, %cst_10 {dimension_numbers = #tpu.dot_dimension_numbers<[1], [0], [0], [1], [0, 0, 1, 1], [], []>} : vector<2x128xbf16>, vector<128x32xbf16>, vector<2x32xf32> -> vector<2x32xf32>
    %15 = arith.addf %9, %14 : vector<2x32xf32>
    %16 = vector.extract_strided_slice %8 {offsets = [2, 0], sizes = [2, 128], strides = [1, 1]} : vector<32x128xbf16> to vector<2x128xbf16>
    %c1 = arith.constant 1 : index
    %c0_11 = arith.constant 0 : index
    %c0_12 = arith.constant 0 : index
    %17 = vector.load %arg4[%c1, %c0_11, %c0_12] : memref<16x32x128xbf16, #tpu.memory_space<vmem>>, vector<1x32x128xbf16>
    %18 = vector.shape_cast %17 : vector<1x32x128xbf16> to vector<32x128xbf16>
    %19 = tpu.transpose %18, [1, 0] : vector<32x128xbf16> -> vector<128x32xbf16>
    %cst_13 = arith.constant dense<0.000000e+00> : vector<2x32xf32>
    %20 = tpu.matmul %16, %19, %cst_13 {dimension_numbers = #tpu.dot_dimension_numbers<[1], [0], [0], [1], [0, 0, 1, 1], [], []>} : vector<2x128xbf16>, vector<128x32xbf16>, vector<2x32xf32> -> vector<2x32xf32>
    %21 = arith.addf %15, %20 : vector<2x32xf32>
    %22 = vector.extract_strided_slice %8 {offsets = [4, 0], sizes = [2, 128], strides = [1, 1]} : vector<32x128xbf16> to vector<2x128xbf16>
    %c2 = arith.constant 2 : index
    %c0_14 = arith.constant 0 : index
    %c0_15 = arith.constant 0 : index
    %23 = vector.load %arg4[%c2, %c0_14, %c0_15] : memref<16x32x128xbf16, #tpu.memory_space<vmem>>, vector<1x32x128xbf16>
    %24 = vector.shape_cast %23 : vector<1x32x128xbf16> to vector<32x128xbf16>
    %25 = tpu.transpose %24, [1, 0] : vector<32x128xbf16> -> vector<128x32xbf16>
    %cst_16 = arith.constant dense<0.000000e+00> : vector<2x32xf32>
    %26 = tpu.matmul %22, %25, %cst_16 {dimension_numbers = #tpu.dot_dimension_numbers<[1], [0], [0], [1], [0, 0, 1, 1], [], []>} : vector<2x128xbf16>, vector<128x32xbf16>, vector<2x32xf32> -> vector<2x32xf32>
    %27 = arith.addf %21, %26 : vector<2x32xf32>
    %28 = vector.extract_strided_slice %8 {offsets = [6, 0], sizes = [2, 128], strides = [1, 1]} : vector<32x128xbf16> to vector<2x128xbf16>
    %c3 = arith.constant 3 : index
    %c0_17 = arith.constant 0 : index
    %c0_18 = arith.constant 0 : index
    %29 = vector.load %arg4[%c3, %c0_17, %c0_18] : memref<16x32x128xbf16, #tpu.memory_space<vmem>>, vector<1x32x128xbf16>
    %30 = vector.shape_cast %29 : vector<1x32x128xbf16> to vector<32x128xbf16>
    %31 = tpu.transpose %30, [1, 0] : vector<32x128xbf16> -> vector<128x32xbf16>
    %cst_19 = arith.constant dense<0.000000e+00> : vector<2x32xf32>
    %32 = tpu.matmul %28, %31, %cst_19 {dimension_numbers = #tpu.dot_dimension_numbers<[1], [0], [0], [1], [0, 0, 1, 1], [], []>} : vector<2x128xbf16>, vector<128x32xbf16>, vector<2x32xf32> -> vector<2x32xf32>
    %33 = arith.addf %27, %32 : vector<2x32xf32>
    %34 = vector.extract_strided_slice %8 {offsets = [8, 0], sizes = [2, 128], strides = [1, 1]} : vector<32x128xbf16> to vector<2x128xbf16>
    %c4 = arith.constant 4 : index
    %c0_20 = arith.constant 0 : index
    %c0_21 = arith.constant 0 : index
    %35 = vector.load %arg4[%c4, %c0_20, %c0_21] : memref<16x32x128xbf16, #tpu.memory_space<vmem>>, vector<1x32x128xbf16>
    %36 = vector.shape_cast %35 : vector<1x32x128xbf16> to vector<32x128xbf16>
    %37 = tpu.transpose %36, [1, 0] : vector<32x128xbf16> -> vector<128x32xbf16>
    %cst_22 = arith.constant dense<0.000000e+00> : vector<2x32xf32>
    %38 = tpu.matmul %34, %37, %cst_22 {dimension_numbers = #tpu.dot_dimension_numbers<[1], [0], [0], [1], [0, 0, 1, 1], [], []>} : vector<2x128xbf16>, vector<128x32xbf16>, vector<2x32xf32> -> vector<2x32xf32>
    %39 = arith.addf %33, %38 : vector<2x32xf32>
    %40 = vector.extract_strided_slice %8 {offsets = [10, 0], sizes = [2, 128], strides = [1, 1]} : vector<32x128xbf16> to vector<2x128xbf16>
    %c5 = arith.constant 5 : index
    %c0_23 = arith.constant 0 : index
    %c0_24 = arith.constant 0 : index
    %41 = vector.load %arg4[%c5, %c0_23, %c0_24] : memref<16x32x128xbf16, #tpu.memory_space<vmem>>, vector<1x32x128xbf16>
    %42 = vector.shape_cast %41 : vector<1x32x128xbf16> to vector<32x128xbf16>
    %43 = tpu.transpose %42, [1, 0] : vector<32x128xbf16> -> vector<128x32xbf16>
    %cst_25 = arith.constant dense<0.000000e+00> : vector<2x32xf32>
    %44 = tpu.matmul %40, %43, %cst_25 {dimension_numbers = #tpu.dot_dimension_numbers<[1], [0], [0], [1], [0, 0, 1, 1], [], []>} : vector<2x128xbf16>, vector<128x32xbf16>, vector<2x32xf32> -> vector<2x32xf32>
    %45 = arith.addf %39, %44 : vector<2x32xf32>
    %46 = vector.extract_strided_slice %8 {offsets = [12, 0], sizes = [2, 128], strides = [1, 1]} : vector<32x128xbf16> to vector<2x128xbf16>
    %c6 = arith.constant 6 : index
    %c0_26 = arith.constant 0 : index
    %c0_27 = arith.constant 0 : index
    %47 = vector.load %arg4[%c6, %c0_26, %c0_27] : memref<16x32x128xbf16, #tpu.memory_space<vmem>>, vector<1x32x128xbf16>
    %48 = vector.shape_cast %47 : vector<1x32x128xbf16> to vector<32x128xbf16>
    %49 = tpu.transpose %48, [1, 0] : vector<32x128xbf16> -> vector<128x32xbf16>
    %cst_28 = arith.constant dense<0.000000e+00> : vector<2x32xf32>
    %50 = tpu.matmul %46, %49, %cst_28 {dimension_numbers = #tpu.dot_dimension_numbers<[1], [0], [0], [1], [0, 0, 1, 1], [], []>} : vector<2x128xbf16>, vector<128x32xbf16>, vector<2x32xf32> -> vector<2x32xf32>
    %51 = arith.addf %45, %50 : vector<2x32xf32>
    %52 = vector.extract_strided_slice %8 {offsets = [14, 0], sizes = [2, 128], strides = [1, 1]} : vector<32x128xbf16> to vector<2x128xbf16>
    %c7 = arith.constant 7 : index
    %c0_29 = arith.constant 0 : index
    %c0_30 = arith.constant 0 : index
    %53 = vector.load %arg4[%c7, %c0_29, %c0_30] : memref<16x32x128xbf16, #tpu.memory_space<vmem>>, vector<1x32x128xbf16>
    %54 = vector.shape_cast %53 : vector<1x32x128xbf16> to vector<32x128xbf16>
    %55 = tpu.transpose %54, [1, 0] : vector<32x128xbf16> -> vector<128x32xbf16>
    %cst_31 = arith.constant dense<0.000000e+00> : vector<2x32xf32>
    %56 = tpu.matmul %52, %55, %cst_31 {dimension_numbers = #tpu.dot_dimension_numbers<[1], [0], [0], [1], [0, 0, 1, 1], [], []>} : vector<2x128xbf16>, vector<128x32xbf16>, vector<2x32xf32> -> vector<2x32xf32>
    %57 = arith.addf %51, %56 : vector<2x32xf32>
    %58 = vector.extract_strided_slice %8 {offsets = [16, 0], sizes = [2, 128], strides = [1, 1]} : vector<32x128xbf16> to vector<2x128xbf16>
    %c8 = arith.constant 8 : index
    %c0_32 = arith.constant 0 : index
    %c0_33 = arith.constant 0 : index
    %59 = vector.load %arg4[%c8, %c0_32, %c0_33] : memref<16x32x128xbf16, #tpu.memory_space<vmem>>, vector<1x32x128xbf16>
    %60 = vector.shape_cast %59 : vector<1x32x128xbf16> to vector<32x128xbf16>
    %61 = tpu.transpose %60, [1, 0] : vector<32x128xbf16> -> vector<128x32xbf16>
    %cst_34 = arith.constant dense<0.000000e+00> : vector<2x32xf32>
    %62 = tpu.matmul %58, %61, %cst_34 {dimension_numbers = #tpu.dot_dimension_numbers<[1], [0], [0], [1], [0, 0, 1, 1], [], []>} : vector<2x128xbf16>, vector<128x32xbf16>, vector<2x32xf32> -> vector<2x32xf32>
    %63 = arith.addf %57, %62 : vector<2x32xf32>
    %64 = vector.extract_strided_slice %8 {offsets = [18, 0], sizes = [2, 128], strides = [1, 1]} : vector<32x128xbf16> to vector<2x128xbf16>
    %c9 = arith.constant 9 : index
    %c0_35 = arith.constant 0 : index
    %c0_36 = arith.constant 0 : index
    %65 = vector.load %arg4[%c9, %c0_35, %c0_36] : memref<16x32x128xbf16, #tpu.memory_space<vmem>>, vector<1x32x128xbf16>
    %66 = vector.shape_cast %65 : vector<1x32x128xbf16> to vector<32x128xbf16>
    %67 = tpu.transpose %66, [1, 0] : vector<32x128xbf16> -> vector<128x32xbf16>
    %cst_37 = arith.constant dense<0.000000e+00> : vector<2x32xf32>
    %68 = tpu.matmul %64, %67, %cst_37 {dimension_numbers = #tpu.dot_dimension_numbers<[1], [0], [0], [1], [0, 0, 1, 1], [], []>} : vector<2x128xbf16>, vector<128x32xbf16>, vector<2x32xf32> -> vector<2x32xf32>
    %69 = arith.addf %63, %68 : vector<2x32xf32>
    %70 = vector.extract_strided_slice %8 {offsets = [20, 0], sizes = [2, 128], strides = [1, 1]} : vector<32x128xbf16> to vector<2x128xbf16>
    %c10 = arith.constant 10 : index
    %c0_38 = arith.constant 0 : index
    %c0_39 = arith.constant 0 : index
    %71 = vector.load %arg4[%c10, %c0_38, %c0_39] : memref<16x32x128xbf16, #tpu.memory_space<vmem>>, vector<1x32x128xbf16>
    %72 = vector.shape_cast %71 : vector<1x32x128xbf16> to vector<32x128xbf16>
    %73 = tpu.transpose %72, [1, 0] : vector<32x128xbf16> -> vector<128x32xbf16>
    %cst_40 = arith.constant dense<0.000000e+00> : vector<2x32xf32>
    %74 = tpu.matmul %70, %73, %cst_40 {dimension_numbers = #tpu.dot_dimension_numbers<[1], [0], [0], [1], [0, 0, 1, 1], [], []>} : vector<2x128xbf16>, vector<128x32xbf16>, vector<2x32xf32> -> vector<2x32xf32>
    %75 = arith.addf %69, %74 : vector<2x32xf32>
    %76 = vector.extract_strided_slice %8 {offsets = [22, 0], sizes = [2, 128], strides = [1, 1]} : vector<32x128xbf16> to vector<2x128xbf16>
    %c11 = arith.constant 11 : index
    %c0_41 = arith.constant 0 : index
    %c0_42 = arith.constant 0 : index
    %77 = vector.load %arg4[%c11, %c0_41, %c0_42] : memref<16x32x128xbf16, #tpu.memory_space<vmem>>, vector<1x32x128xbf16>
    %78 = vector.shape_cast %77 : vector<1x32x128xbf16> to vector<32x128xbf16>
    %79 = tpu.transpose %78, [1, 0] : vector<32x128xbf16> -> vector<128x32xbf16>
    %cst_43 = arith.constant dense<0.000000e+00> : vector<2x32xf32>
    %80 = tpu.matmul %76, %79, %cst_43 {dimension_numbers = #tpu.dot_dimension_numbers<[1], [0], [0], [1], [0, 0, 1, 1], [], []>} : vector<2x128xbf16>, vector<128x32xbf16>, vector<2x32xf32> -> vector<2x32xf32>
    %81 = arith.addf %75, %80 : vector<2x32xf32>
    %82 = vector.extract_strided_slice %8 {offsets = [24, 0], sizes = [2, 128], strides = [1, 1]} : vector<32x128xbf16> to vector<2x128xbf16>
    %c12 = arith.constant 12 : index
    %c0_44 = arith.constant 0 : index
    %c0_45 = arith.constant 0 : index
    %83 = vector.load %arg4[%c12, %c0_44, %c0_45] : memref<16x32x128xbf16, #tpu.memory_space<vmem>>, vector<1x32x128xbf16>
    %84 = vector.shape_cast %83 : vector<1x32x128xbf16> to vector<32x128xbf16>
    %85 = tpu.transpose %84, [1, 0] : vector<32x128xbf16> -> vector<128x32xbf16>
    %cst_46 = arith.constant dense<0.000000e+00> : vector<2x32xf32>
    %86 = tpu.matmul %82, %85, %cst_46 {dimension_numbers = #tpu.dot_dimension_numbers<[1], [0], [0], [1], [0, 0, 1, 1], [], []>} : vector<2x128xbf16>, vector<128x32xbf16>, vector<2x32xf32> -> vector<2x32xf32>
    %87 = arith.addf %81, %86 : vector<2x32xf32>
    %88 = vector.extract_strided_slice %8 {offsets = [26, 0], sizes = [2, 128], strides = [1, 1]} : vector<32x128xbf16> to vector<2x128xbf16>
    %c13 = arith.constant 13 : index
    %c0_47 = arith.constant 0 : index
    %c0_48 = arith.constant 0 : index
    %89 = vector.load %arg4[%c13, %c0_47, %c0_48] : memref<16x32x128xbf16, #tpu.memory_space<vmem>>, vector<1x32x128xbf16>
    %90 = vector.shape_cast %89 : vector<1x32x128xbf16> to vector<32x128xbf16>
    %91 = tpu.transpose %90, [1, 0] : vector<32x128xbf16> -> vector<128x32xbf16>
    %cst_49 = arith.constant dense<0.000000e+00> : vector<2x32xf32>
    %92 = tpu.matmul %88, %91, %cst_49 {dimension_numbers = #tpu.dot_dimension_numbers<[1], [0], [0], [1], [0, 0, 1, 1], [], []>} : vector<2x128xbf16>, vector<128x32xbf16>, vector<2x32xf32> -> vector<2x32xf32>
    %93 = arith.addf %87, %92 : vector<2x32xf32>
    %94 = vector.extract_strided_slice %8 {offsets = [28, 0], sizes = [2, 128], strides = [1, 1]} : vector<32x128xbf16> to vector<2x128xbf16>
    %c14 = arith.constant 14 : index
    %c0_50 = arith.constant 0 : index
    %c0_51 = arith.constant 0 : index
    %95 = vector.load %arg4[%c14, %c0_50, %c0_51] : memref<16x32x128xbf16, #tpu.memory_space<vmem>>, vector<1x32x128xbf16>
    %96 = vector.shape_cast %95 : vector<1x32x128xbf16> to vector<32x128xbf16>
    %97 = tpu.transpose %96, [1, 0] : vector<32x128xbf16> -> vector<128x32xbf16>
    %cst_52 = arith.constant dense<0.000000e+00> : vector<2x32xf32>
    %98 = tpu.matmul %94, %97, %cst_52 {dimension_numbers = #tpu.dot_dimension_numbers<[1], [0], [0], [1], [0, 0, 1, 1], [], []>} : vector<2x128xbf16>, vector<128x32xbf16>, vector<2x32xf32> -> vector<2x32xf32>
    %99 = arith.addf %93, %98 : vector<2x32xf32>
    %100 = vector.extract_strided_slice %8 {offsets = [30, 0], sizes = [2, 128], strides = [1, 1]} : vector<32x128xbf16> to vector<2x128xbf16>
    %c15 = arith.constant 15 : index
    %c0_53 = arith.constant 0 : index
    %c0_54 = arith.constant 0 : index
    %101 = vector.load %arg4[%c15, %c0_53, %c0_54] : memref<16x32x128xbf16, #tpu.memory_space<vmem>>, vector<1x32x128xbf16>
    %102 = vector.shape_cast %101 : vector<1x32x128xbf16> to vector<32x128xbf16>
    %103 = tpu.transpose %102, [1, 0] : vector<32x128xbf16> -> vector<128x32xbf16>
    %cst_55 = arith.constant dense<0.000000e+00> : vector<2x32xf32>
    %104 = tpu.matmul %100, %103, %cst_55 {dimension_numbers = #tpu.dot_dimension_numbers<[1], [0], [0], [1], [0, 0, 1, 1], [], []>} : vector<2x128xbf16>, vector<128x32xbf16>, vector<2x32xf32> -> vector<2x32xf32>
    %105 = arith.addf %99, %104 : vector<2x32xf32>
    %c0_56 = arith.constant 0 : index
    %c0_57 = arith.constant 0 : index
    %106 = vector.load %arg5[%c0_56, %c0_57] : memref<1x32xf32, #tpu.memory_space<vmem>>, vector<1x32xf32>
    %107 = vector.broadcast %106 : vector<1x32xf32> to vector<2x32xf32>
    %108 = arith.addf %105, %107 : vector<2x32xf32>
    %c0_58 = arith.constant 0 : index
    %c0_59 = arith.constant 0 : index
    %109 = vector.load %arg6[%c0_58, %c0_59] : memref<2x32xf32, #tpu.memory_space<vmem>>, vector<2x32xf32>
    tpu.vector_store %arg6[%c0_58, %c0_59], %108 {strides = array<i32>} : memref<2x32xf32, #tpu.memory_space<vmem>>, vector<2x32xf32>,
    return
  }
  func.func @transform_0(%arg0: i32) -> (i32, i32) {
    %c0_i32 = arith.constant 0 : i32
    %c0_i32_0 = arith.constant 0 : i32
    %c0_i32_1 = arith.constant 0 : i32
    return %c0_i32, %c0_i32_0 : i32, i32
  }
  func.func @transform_1(%arg0: i32) -> (i32, i32) {
    %c0_i32 = arith.constant 0 : i32
    %c0_i32_0 = arith.constant 0 : i32
    %c0_i32_1 = arith.constant 0 : i32
    return %c0_i32, %c0_i32_0 : i32, i32
  }
  func.func @transform_2(%arg0: i32) -> (i32, i32) {
    %c0_i32 = arith.constant 0 : i32
    %c0_i32_0 = arith.constant 0 : i32
    %c0_i32_1 = arith.constant 0 : i32
    return %c0_i32, %c0_i32_0 : i32, i32
  }
  func.func @transform_3(%arg0: i32) -> (i32, i32, i32) {
    %c0_i32 = arith.constant 0 : i32
    %c0_i32_0 = arith.constant 0 : i32
    %c0_i32_1 = arith.constant 0 : i32
    %c0_i32_2 = arith.constant 0 : i32
    return %c0_i32, %c0_i32_0, %c0_i32_1 : i32, i32, i32
  }
  func.func @transform_4(%arg0: i32) -> (i32, i32) {
    %c0_i32 = arith.constant 0 : i32
    %c0_i32_0 = arith.constant 0 : i32
    %c0_i32_1 = arith.constant 0 : i32
    return %c0_i32, %c0_i32_0 : i32, i32
  }
  func.func @transform_5(%arg0: i32) -> (i32, i32) {
    %c0_i32 = arith.constant 0 : i32
    %c0_i32_0 = arith.constant 0 : i32
    %c0_i32_1 = arith.constant 0 : i32
    return %c0_i32, %c0_i32_0 : i32, i32
  }
}

</mosaic_0001>

<llo_original>
// kernel: nec_forward.1
$region0: #{nec_forward.1}
  #allocation0 [shape = 'u32[]', space=smem, size = 0x4, offset = 0x4, fixed_abs, tag = 'smem constant byte address 0x4 - core index']
  #allocation1 [shape = 'u32[144,128]{1,0:T(1,128)}', space=vmem, size = 0x12000, scoped, tag = 'internal scratch']
  %s0 = inlined_call_operand.vmem [shape: bf16[32,384], index: 0, kind: input, shape index: {}]
  %s1 = inlined_call_operand.vmem [shape: bf16[384,128], index: 1, kind: input, shape index: {}]
  %s2 = inlined_call_operand.vmem [shape: f32[1,128], index: 2, kind: input, shape index: {}]
  %s3 = inlined_call_operand.vmem [shape: bf16[16,32,128], index: 3, kind: input, shape index: {}]
  %s4 = inlined_call_operand.vmem [shape: f32[1,32], index: 4, kind: input, shape index: {}]
  %s5 = inlined_call_operand.hbm [shape: f32[2,32], index: 5, kind: output, shape index: {}]
  %s6 = sld [smem:[#allocation0]]
  $region30: #{nec_forward.1} parent=0
    _
  %s8 = ssub.s32 1, %s6
  %s9 = scalar_select 0, %s8, %s6
  $region1: #{nec_forward.1} parent=0
    #allocation2 [shape = 'u8[1024]{0}', space=vmem, size = 0x400, scoped, tag = 'output window, operand 0, single buffered']
    #allocation3 [shape = 's32[1]{0}', space=sflag, size = 0x4, scoped, tag = 'scoped memory for nec_forward.1']
    %10 = vsyncpa [#allocation3], 0
    // Predicated region
    $region2: #{nec_forward.1} parent=1 // pred_check
      _
    $region3: #{nec_forward.1} parent=1 // pred_check_branch
      %12 = sbr.rel (0) target = $region5
    $region4: #{nec_forward.1} parent=1 // pred_region
      _
    $region5: #{nec_forward.1} parent=1 // pred_fallthru
      _
    // Predicated region
    $region6: #{nec_forward.1} parent=1 // pred_check
      _
    $region7: #{nec_forward.1} parent=1 // pred_check_branch
      %14 = sbr.rel (0) target = $region9
    $region8: #{nec_forward.1} parent=1 // pred_region
      _
    $region9: #{nec_forward.1} parent=1 // pred_fallthru
      _
    // Predicated region
    $region10: #{nec_forward.1} parent=1 // pred_check
      _
    $region11: #{nec_forward.1} parent=1 // pred_check_branch
      %16 = sbr.rel (0) target = $region13
    $region12: #{nec_forward.1} parent=1 // pred_region
      _
    $region13: #{nec_forward.1} parent=1 // pred_fallthru
      _
    // Predicated region
    $region14: #{nec_forward.1} parent=1 // pred_check
      _
    $region15: #{nec_forward.1} parent=1 // pred_check_branch
      %18 = sbr.rel (0) target = $region17
    $region16: #{nec_forward.1} parent=1 // pred_region
      _
    $region17: #{nec_forward.1} parent=1 // pred_fallthru
      _
    // Predicated region
    $region18: #{nec_forward.1} parent=1 // pred_check
      _
    $region19: #{nec_forward.1} parent=1 // pred_check_branch
      %20 = sbr.rel (0) target = $region21
    $region20: #{nec_forward.1} parent=1 // pred_region
      _
    $region21: #{nec_forward.1} parent=1 // pred_fallthru
      _
    %v22 = vld [vmem:[%s0] sm:$0xff]
    %v23 = vld [vmem:[%s0 + $0x8] sm:$0xf]
    %v24 = vld [vmem:[%s0 + $0xc] sm:$0xff]
    %v25 = vld [vmem:[%s0 + $0x14] sm:$0xf]
    %v26 = vld [vmem:[%s0 + $0x18] sm:$0xff]
    %v27 = vld [vmem:[%s0 + $0x20] sm:$0xf]
    %v28 = vld [vmem:[%s0 + $0x24] sm:$0xff]
    %v29 = vld [vmem:[%s0 + $0x2c] sm:$0xf]
    %v30 = vld [vmem:[%s1] sm:$0xf]
    %v31 = vld [vmem:[%s1 + $0x4] sm:$0xf]
    %v32 = vld [vmem:[%s1 + $0x8] sm:$0xf]
    %v33 = vld [vmem:[%s1 + $0xc] sm:$0xf]
    %v34 = vld [vmem:[%s1 + $0x10] sm:$0xf]
    %v35 = vld [vmem:[%s1 + $0x14] sm:$0xf]
    %v36 = vld [vmem:[%s1 + $0x18] sm:$0xf]
    %v37 = vld [vmem:[%s1 + $0x1c] sm:$0xf]
    %v38 = vld [vmem:[%s1 + $0x20] sm:$0xf]
    %v39 = vld [vmem:[%s1 + $0x24] sm:$0xf]
    %v40 = vld [vmem:[%s1 + $0x28] sm:$0xf]
    %v41 = vld [vmem:[%s1 + $0x2c] sm:$0xf]
    %v42 = vld [vmem:[%s1 + $0x30] sm:$0xf]
    %v43 = vld [vmem:[%s1 + $0x34] sm:$0xf]
    %v44 = vld [vmem:[%s1 + $0x38] sm:$0xf]
    %v45 = vld [vmem:[%s1 + $0x3c] sm:$0xf]
    %v46 = vld [vmem:[%s1 + $0x40] sm:$0xf]
    %v47 = vld [vmem:[%s1 + $0x44] sm:$0xf]
    %v48 = vld [vmem:[%s1 + $0x48] sm:$0xf]
    %v49 = vld [vmem:[%s1 + $0x4c] sm:$0xf]
    %v50 = vld [vmem:[%s1 + $0x50] sm:$0xf]
    %v51 = vld [vmem:[%s1 + $0x54] sm:$0xf]
    %v52 = vld [vmem:[%s1 + $0x58] sm:$0xf]
    %v53 = vld [vmem:[%s1 + $0x5c] sm:$0xf]
    %v54 = vld [vmem:[%s1 + $0x60] sm:$0xf]
    %v55 = vld [vmem:[%s1 + $0x64] sm:$0xf]
    %v56 = vld [vmem:[%s1 + $0x68] sm:$0xf]
    %v57 = vld [vmem:[%s1 + $0x6c] sm:$0xf]
    %v58 = vld [vmem:[%s1 + $0x70] sm:$0xf]
    %v59 = vld [vmem:[%s1 + $0x74] sm:$0xf]
    %v60 = vld [vmem:[%s1 + $0x78] sm:$0xf]
    %v61 = vld [vmem:[%s1 + $0x7c] sm:$0xf]
    %v62 = vld [vmem:[%s1 + $0x80] sm:$0xf]
    %v63 = vld [vmem:[%s1 + $0x84] sm:$0xf]
    %v64 = vld [vmem:[%s1 + $0x88] sm:$0xf]
    %v65 = vld [vmem:[%s1 + $0x8c] sm:$0xf]
    %v66 = vld [vmem:[%s1 + $0x90] sm:$0xf]
    %v67 = vld [vmem:[%s1 + $0x94] sm:$0xf]
    %v68 = vld [vmem:[%s1 + $0x98] sm:$0xf]
    %v69 = vld [vmem:[%s1 + $0x9c] sm:$0xf]
    %v70 = vld [vmem:[%s1 + $0xa0] sm:$0xf]
    %v71 = vld [vmem:[%s1 + $0xa4] sm:$0xf]
    %v72 = vld [vmem:[%s1 + $0xa8] sm:$0xf]
    %v73 = vld [vmem:[%s1 + $0xac] sm:$0xf]
    %v74 = vld [vmem:[%s1 + $0xb0] sm:$0xf]
    %v75 = vld [vmem:[%s1 + $0xb4] sm:$0xf]
    %v76 = vld [vmem:[%s1 + $0xb8] sm:$0xf]
    %v77 = vld [vmem:[%s1 + $0xbc] sm:$0xf]
    %v78 = vld [vmem:[%s2] sm:$0x1]
    %v80 = vlaneseq
    %v81 = vshrl.u32 %v80, 7
    %v82 = vsub.s32 0, %v81
    %v83 = vrot.slane %v78, %v82
    %v93 = vunpack.c.l.b16 %v22
    %v94 = vunpack.c.h.b16 %v22
    %v95 = vunpack.c.l.b16 %v23
    %v96 = vunpack.c.l.b16 %v24
    %v97 = vunpack.c.h.b16 %v24
    %v98 = vunpack.c.l.b16 %v25
    %v99 = vunpack.c.l.b16 %v26
    %v100 = vunpack.c.h.b16 %v26
    %v101 = vunpack.c.l.b16 %v27
    %v102 = vunpack.c.l.b16 %v28
    %v103 = vunpack.c.h.b16 %v28
    %v104 = vunpack.c.l.b16 %v29
    %v105 = vpack.c.b16 %v96, %v93
    %v106 = vpack.c.b16 %v97, %v94
    %v107 = vpack.c.b16 %v98, %v95
    %v108 = vpack.c.b16 %v102, %v99
    %v109 = vpack.c.b16 %v103, %v100
    %v110 = vpack.c.b16 %v104, %v101
    %v165 = vunpack.c.l.b16 %v30
    %v166 = vunpack.c.l.b16 %v31
    %v167 = vunpack.c.l.b16 %v32
    %v168 = vunpack.c.l.b16 %v33
    %v169 = vunpack.c.l.b16 %v34
    %v170 = vunpack.c.l.b16 %v35
    %v171 = vunpack.c.l.b16 %v36
    %v172 = vunpack.c.l.b16 %v37
    %v173 = vunpack.c.l.b16 %v38
    %v174 = vunpack.c.l.b16 %v39
    %v175 = vunpack.c.l.b16 %v40
    %v176 = vunpack.c.l.b16 %v41
    %v177 = vunpack.c.l.b16 %v42
    %v178 = vunpack.c.l.b16 %v43
    %v179 = vunpack.c.l.b16 %v44
    %v180 = vunpack.c.l.b16 %v45
    %v181 = vunpack.c.l.b16 %v46
    %v182 = vunpack.c.l.b16 %v47
    %v183 = vunpack.c.l.b16 %v48
    %v184 = vunpack.c.l.b16 %v49
    %v185 = vunpack.c.l.b16 %v50
    %v186 = vunpack.c.l.b16 %v51
    %v187 = vunpack.c.l.b16 %v52
    %v188 = vunpack.c.l.b16 %v53
    %v189 = vunpack.c.l.b16 %v54
    %v190 = vunpack.c.l.b16 %v55
    %v191 = vunpack.c.l.b16 %v56
    %v192 = vunpack.c.l.b16 %v57
    %v193 = vunpack.c.l.b16 %v58
    %v194 = vunpack.c.l.b16 %v59
    %v195 = vunpack.c.l.b16 %v60
    %v196 = vunpack.c.l.b16 %v61
    %v197 = vunpack.c.l.b16 %v62
    %v198 = vunpack.c.l.b16 %v63
    %v199 = vunpack.c.l.b16 %v64
    %v200 = vunpack.c.l.b16 %v65
    %v201 = vunpack.c.l.b16 %v66
    %v202 = vunpack.c.l.b16 %v67
    %v203 = vunpack.c.l.b16 %v68
    %v204 = vunpack.c.l.b16 %v69
    %v205 = vunpack.c.l.b16 %v70
    %v206 = vunpack.c.l.b16 %v71
    %v207 = vunpack.c.l.b16 %v72
    %v208 = vunpack.c.l.b16 %v73
    %v209 = vunpack.c.l.b16 %v74
    %v210 = vunpack.c.l.b16 %v75
    %v211 = vunpack.c.l.b16 %v76
    %v212 = vunpack.c.l.b16 %v77
    %v213 = vpack.c.b16 %v166, %v165
    %v214 = vpack.c.b16 %v168, %v167
    %v215 = vpack.c.b16 %v170, %v169
    %v216 = vpack.c.b16 %v172, %v171
    %v217 = vpack.c.b16 %v174, %v173
    %v218 = vpack.c.b16 %v176, %v175
    %v219 = vpack.c.b16 %v178, %v177
    %v220 = vpack.c.b16 %v180, %v179
    %v221 = vpack.c.b16 %v182, %v181
    %v222 = vpack.c.b16 %v184, %v183
    %v223 = vpack.c.b16 %v186, %v185
    %v224 = vpack.c.b16 %v188, %v187
    %v225 = vpack.c.b16 %v190, %v189
    %v226 = vpack.c.b16 %v192, %v191
    %v227 = vpack.c.b16 %v194, %v193
    %v228 = vpack.c.b16 %v196, %v195
    %v229 = vpack.c.b16 %v198, %v197
    %v230 = vpack.c.b16 %v200, %v199
    %v231 = vpack.c.b16 %v202, %v201
    %v232 = vpack.c.b16 %v204, %v203
    %v233 = vpack.c.b16 %v206, %v205
    %v234 = vpack.c.b16 %v208, %v207
    %v235 = vpack.c.b16 %v210, %v209
    %v236 = vpack.c.b16 %v212, %v211
    %261 = vmatprep.subr.bf16.mxu0 0
    %262 = vmatpush1.bf16.msra.mxu0 %v213
    %263 = vmatprep.subr.bf16.mxu0 0
    %264 = vmatpush1.bf16.msra.mxu0 %v214
    %265 = vmatprep.subr.bf16.mxu0 0
    %266 = vmatpush1.bf16.msra.mxu0 %v215
    %267 = vmatprep.subr.bf16.mxu0 0
    %268 = vmatpush1.bf16.msra.mxu0 %v216
    %269 = vmatprep.subr.bf16.mxu0 0
    %270 = vmatpush1.bf16.msra.mxu0 %v217
    %271 = vmatprep.subr.bf16.mxu0 0
    %272 = vmatpush1.bf16.msra.mxu0 %v218
    %273 = vmatprep.subr.bf16.mxu0 0
    %274 = vmatpush1.bf16.msra.mxu0 %v219
    %275 = vmatprep.subr.bf16.mxu0 0
    %276 = vmatpush1.bf16.msra.mxu0 %v220
    %277 = vmatprep.subr.bf16.mxu0 0
    %278 = vmatpush1.bf16.msra.mxu0 %v221
    %279 = vmatprep.subr.bf16.mxu0 0
    %280 = vmatpush1.bf16.msra.mxu0 %v222
    %281 = vmatprep.subr.bf16.mxu0 0
    %282 = vmatpush1.bf16.msra.mxu0 %v223
    %283 = vmatprep.subr.bf16.mxu0 0
    %284 = vmatpush1.bf16.msra.mxu0 %v224
    %285 = vmatprep.subr.bf16.mxu0 0
    %286 = vmatpush1.bf16.msra.mxu0 %v225
    %287 = vmatprep.subr.bf16.mxu0 0
    %288 = vmatpush1.bf16.msra.mxu0 %v226
    %289 = vmatprep.subr.bf16.mxu0 0
    %290 = vmatpush1.bf16.msra.mxu0 %v227
    %291 = vmatprep.subr.bf16.mxu0 0
    %292 = vmatpush1.bf16.msra.mxu0 %v228
    %293 = vmatprep.mubr.bf16.mxu0 %v106
    %294 = vmatmul.mubr.bf16.gmra.mrb[0].mxu0 %v105
    %v295 = vpop.f32.mrb[0].mxu0
    %v296 = vadd.f32 %v83, %v295
    %v297 = vpop.f32.mrb[0].mxu0
    %v298 = vpop.f32.mrb[0].mxu0
    %v299 = vadd.f32 %v83, %v298
    %v300 = vpop.f32.mrb[0].mxu0
    %301 = vmatprep.mubr.bf16.mxu0 %v109
    %302 = vmatmul.mubr.bf16.gmra.mrb[0].mxu0 %v108
    %v303 = vpop.f32.mrb[0].mxu0
    %v304 = vadd.f32 %v83, %v303
    %v305 = vpop.f32.mrb[0].mxu0
    %v306 = vpop.f32.mrb[0].mxu0
    %v307 = vadd.f32 %v83, %v306
    %v308 = vpop.f32.mrb[0].mxu0
    %309 = vdwg.mxu0
    %310 = vmatprep.subr.bf16.mxu0 0
    %311 = vmatpush1.bf16.msra.mxu0 %v229
    %312 = vmatprep.subr.bf16.mxu0 0
    %313 = vmatpush1.bf16.msra.mxu0 %v230
    %314 = vmatprep.subr.bf16.mxu0 0
    %315 = vmatpush1.bf16.msra.mxu0 %v231
    %316 = vmatprep.subr.bf16.mxu0 0
    %317 = vmatpush1.bf16.msra.mxu0 %v232
    %318 = vmatprep.subr.bf16.mxu0 0
    %319 = vmatpush1.bf16.msra.mxu0 %v233
    %320 = vmatprep.subr.bf16.mxu0 0
    %321 = vmatpush1.bf16.msra.mxu0 %v234
    %322 = vmatprep.subr.bf16.mxu0 0
    %323 = vmatpush1.bf16.msra.mxu0 %v235
    %324 = vmatprep.subr.bf16.mxu0 0
    %325 = vmatpush1.bf16.msra.mxu0 %v236
    %326 = vmatprep.subr.bf16.mxu0 0
    %327 = vmatpush1.bf16.msra.mxu0 0
    %328 = vmatprep.subr.bf16.mxu0 0
    %329 = vmatpush1.bf16.msra.mxu0 0
    %330 = vmatprep.subr.bf16.mxu0 0
    %331 = vmatpush1.bf16.msra.mxu0 0
    %332 = vmatprep.subr.bf16.mxu0 0
    %333 = vmatpush1.bf16.msra.mxu0 0
    %334 = vmatprep.subr.bf16.mxu0 0
    %335 = vmatpush1.bf16.msra.mxu0 0
    %336 = vmatprep.subr.bf16.mxu0 0
    %337 = vmatpush1.bf16.msra.mxu0 0
    %338 = vmatprep.subr.bf16.mxu0 0
    %339 = vmatpush1.bf16.msra.mxu0 0
    %340 = vmatprep.subr.bf16.mxu0 0
    %341 = vmatpush1.bf16.msra.mxu0 0
    %342 = vmatprep.mubr.bf16.mxu0 0
    %343 = vmatmul.mubr.bf16.gmra.mrb[0].mxu0 %v107
    %v344 = vpop.f32.mrb[0].mxu0
    %v345 = vadd.f32 %v296, %v344
    %v346 = vpop.f32.mrb[0].mxu0
    %v347 = vpop.f32.mrb[0].mxu0
    %v348 = vadd.f32 %v299, %v347
    %v349 = vpop.f32.mrb[0].mxu0
    %350 = vmatprep.mubr.bf16.mxu0 0
    %351 = vmatmul.mubr.bf16.gmra.mrb[0].mxu0 %v110
    %v352 = vpop.f32.mrb[0].mxu0
    %v353 = vadd.f32 %v304, %v352
    %v354 = vpop.f32.mrb[0].mxu0
    %v355 = vpop.f32.mrb[0].mxu0
    %v356 = vadd.f32 %v307, %v355
    %v357 = vpop.f32.mrb[0].mxu0
    %358 = vdwg.mxu0
    %v359 = vmax.f32 %v345, 0.0
    %v360 = vmax.f32 %v348, 0.0
    %v361 = vmax.f32 %v353, 0.0
    %v362 = vmax.f32 %v356, 0.0
    %v363 = vpack.c.bf16 %v360, %v359
    %v364 = vpack.c.bf16 %v362, %v361
    %v365 = vld [vmem:[%s3] sm:$0xf]
    %v366 = vld [vmem:[%s3 + $0x4] sm:$0xf]
    %v367 = vld [vmem:[%s3 + $0x8] sm:$0xf]
    %v368 = vld [vmem:[%s3 + $0xc] sm:$0xf]
    %s369 = scalar_lea.vmem %s3, 16
    %v370 = vld [vmem:[%s369] sm:$0xf]
    %v371 = vld [vmem:[%s369 + $0x4] sm:$0xf]
    %v372 = vld [vmem:[%s369 + $0x8] sm:$0xf]
    %v373 = vld [vmem:[%s369 + $0xc] sm:$0xf]
    %v375 = vrot.slane %v363, 1
    %v381 = vunpack.c.l.b16 %v370
    %v382 = vunpack.c.l.b16 %v371
    %v383 = vunpack.c.l.b16 %v372
    %v384 = vunpack.c.l.b16 %v373
    %v385 = vpack.c.b16 %v382, %v381
    %v386 = vpack.c.b16 %v384, %v383
    %389 = vmatprep.subr.bf16.mxu0 0
    %390 = vmatpush1.bf16.xpose.msra.mxu0 %v385
    %391 = vmatprep.subr.bf16.mxu0 0
    %392 = vmatpush1.bf16.xpose.msra.mxu0 %v386
    %393 = vmatprep.subr.bf16.mxu0 0
    %394 = vmatpush1.bf16.xpose.msra.mxu0 0
    %395 = vmatprep.subr.bf16.mxu0 0
    %396 = vmatpush1.bf16.xpose.msra.mxu0 0
    %397 = vmatprep.subr.bf16.mxu0 0
    %398 = vmatpush1.bf16.xpose.msra.mxu0 0
    %399 = vmatprep.subr.bf16.mxu0 0
    %400 = vmatpush1.bf16.xpose.msra.mxu0 0
    %401 = vmatprep.subr.bf16.mxu0 0
    %402 = vmatpush1.bf16.xpose.msra.mxu0 0
    %403 = vmatprep.subr.bf16.mxu0 0
    %404 = vmatpush1.bf16.xpose.msra.mxu0 0
    %405 = vmatprep.subr.bf16.mxu0 0
    %406 = vmatpush1.bf16.xpose.msra.mxu0 0
    %407 = vmatprep.subr.bf16.mxu0 0
    %408 = vmatpush1.bf16.xpose.msra.mxu0 0
    %409 = vmatprep.subr.bf16.mxu0 0
    %410 = vmatpush1.bf16.xpose.msra.mxu0 0
    %411 = vmatprep.subr.bf16.mxu0 0
    %412 = vmatpush1.bf16.xpose.msra.mxu0 0
    %413 = vmatprep.subr.bf16.mxu0 0
    %414 = vmatpush1.bf16.xpose.msra.mxu0 0
    %415 = vmatprep.subr.bf16.mxu0 0
    %416 = vmatpush1.bf16.xpose.msra.mxu0 0
    %417 = vmatprep.subr.bf16.mxu0 0
    %418 = vmatpush1.bf16.xpose.msra.mxu0 0
    %419 = vmatprep.subr.bf16.mxu0 0
    %420 = vmatpush1.bf16.xpose.msra.mxu0 0
    %421 = vmatprep.mubr.bf16.mxu0 0
    %422 = vmatmul.mubr.bf16.gmra.mrb[0].mxu0 %v375
    %v423 = vpop.f32.mrb[0].mxu0
    %v424 = vadd.f32 0.0, %v423
    %v425 = vpop.f32.mrb[0].mxu0
    %v426 = vpop.f32.mrb[0].mxu0
    %v427 = vpop.f32.mrb[0].mxu0
    %428 = vdwg.mxu0
    %v433 = vunpack.c.l.b16 %v365
    %v434 = vunpack.c.l.b16 %v366
    %v435 = vunpack.c.l.b16 %v367
    %v436 = vunpack.c.l.b16 %v368
    %v437 = vpack.c.b16 %v434, %v433
    %v438 = vpack.c.b16 %v436, %v435
    %441 = vmatprep.subr.bf16.mxu0 0
    %442 = vmatpush1.bf16.xpose.msra.mxu0 %v437
    %443 = vmatprep.subr.bf16.mxu0 0
    %444 = vmatpush1.bf16.xpose.msra.mxu0 %v438
    %445 = vmatprep.subr.bf16.mxu0 0
    %446 = vmatpush1.bf16.xpose.msra.mxu0 0
    %447 = vmatprep.subr.bf16.mxu0 0
    %448 = vmatpush1.bf16.xpose.msra.mxu0 0
    %449 = vmatprep.subr.bf16.mxu0 0
    %450 = vmatpush1.bf16.xpose.msra.mxu0 0
    %451 = vmatprep.subr.bf16.mxu0 0
    %452 = vmatpush1.bf16.xpose.msra.mxu0 0
    %453 = vmatprep.subr.bf16.mxu0 0
    %454 = vmatpush1.bf16.xpose.msra.mxu0 0
    %455 = vmatprep.subr.bf16.mxu0 0
    %456 = vmatpush1.bf16.xpose.msra.mxu0 0
    %457 = vmatprep.subr.bf16.mxu0 0
    %458 = vmatpush1.bf16.xpose.msra.mxu0 0
    %459 = vmatprep.subr.bf16.mxu0 0
    %460 = vmatpush1.bf16.xpose.msra.mxu0 0
    %461 = vmatprep.subr.bf16.mxu0 0
    %462 = vmatpush1.bf16.xpose.msra.mxu0 0
    %463 = vmatprep.subr.bf16.mxu0 0
    %464 = vmatpush1.bf16.xpose.msra.mxu0 0
    %465 = vmatprep.subr.bf16.mxu0 0
    %466 = vmatpush1.bf16.xpose.msra.mxu0 0
    %467 = vmatprep.subr.bf16.mxu0 0
    %468 = vmatpush1.bf16.xpose.msra.mxu0 0
    %469 = vmatprep.subr.bf16.mxu0 0
    %470 = vmatpush1.bf16.xpose.msra.mxu0 0
    %471 = vmatprep.subr.bf16.mxu0 0
    %472 = vmatpush1.bf16.xpose.msra.mxu0 0
    %473 = vmatprep.mubr.bf16.mxu0 0
    %474 = vmatmul.mubr.bf16.gmra.mrb[0].mxu0 %v363
    %v475 = vpop.f32.mrb[0].mxu0
    %v476 = vadd.f32 %v424, %v475
    %v477 = vpop.f32.mrb[0].mxu0
    %v478 = vpop.f32.mrb[0].mxu0
    %v479 = vpop.f32.mrb[0].mxu0
    %480 = vdwg.mxu0
    %s481 = scalar_lea.vmem %s3, 32
    %v482 = vld [vmem:[%s481] sm:$0xf]
    %v483 = vld [vmem:[%s481 + $0x4] sm:$0xf]
    %v484 = vld [vmem:[%s481 + $0x8] sm:$0xf]
    %v485 = vld [vmem:[%s481 + $0xc] sm:$0xf]
    %v486 = vrot.slane %v363, 2
    %v492 = vunpack.c.l.b16 %v482
    %v493 = vunpack.c.l.b16 %v483
    %v494 = vunpack.c.l.b16 %v484
    %v495 = vunpack.c.l.b16 %v485
    %v496 = vpack.c.b16 %v493, %v492
    %v497 = vpack.c.b16 %v495, %v494
    %500 = vmatprep.subr.bf16.mxu0 0
    %501 = vmatpush1.bf16.xpose.msra.mxu0 %v496
    %502 = vmatprep.subr.bf16.mxu0 0
    %503 = vmatpush1.bf16.xpose.msra.mxu0 %v497
    %504 = vmatprep.subr.bf16.mxu0 0
    %505 = vmatpush1.bf16.xpose.msra.mxu0 0
    %506 = vmatprep.subr.bf16.mxu0 0
    %507 = vmatpush1.bf16.xpose.msra.mxu0 0
    %508 = vmatprep.subr.bf16.mxu0 0
    %509 = vmatpush1.bf16.xpose.msra.mxu0 0
    %510 = vmatprep.subr.bf16.mxu0 0
    %511 = vmatpush1.bf16.xpose.msra.mxu0 0
    %512 = vmatprep.subr.bf16.mxu0 0
    %513 = vmatpush1.bf16.xpose.msra.mxu0 0
    %514 = vmatprep.subr.bf16.mxu0 0
    %515 = vmatpush1.bf16.xpose.msra.mxu0 0
    %516 = vmatprep.subr.bf16.mxu0 0
    %517 = vmatpush1.bf16.xpose.msra.mxu0 0
    %518 = vmatprep.subr.bf16.mxu0 0
    %519 = vmatpush1.bf16.xpose.msra.mxu0 0
    %520 = vmatprep.subr.bf16.mxu0 0
    %521 = vmatpush1.bf16.xpose.msra.mxu0 0
    %522 = vmatprep.subr.bf16.mxu0 0
    %523 = vmatpush1.bf16.xpose.msra.mxu0 0
    %524 = vmatprep.subr.bf16.mxu0 0
    %525 = vmatpush1.bf16.xpose.msra.mxu0 0
    %526 = vmatprep.subr.bf16.mxu0 0
    %527 = vmatpush1.bf16.xpose.msra.mxu0 0
    %528 = vmatprep.subr.bf16.mxu0 0
    %529 = vmatpush1.bf16.xpose.msra.mxu0 0
    %530 = vmatprep.subr.bf16.mxu0 0
    %531 = vmatpush1.bf16.xpose.msra.mxu0 0
    %532 = vmatprep.mubr.bf16.mxu0 0
    %533 = vmatmul.mubr.bf16.gmra.mrb[0].mxu0 %v486
    %v534 = vpop.f32.mrb[0].mxu0
    %v535 = vadd.f32 0.0, %v534
    %v536 = vpop.f32.mrb[0].mxu0
    %v537 = vpop.f32.mrb[0].mxu0
    %v538 = vpop.f32.mrb[0].mxu0
    %539 = vdwg.mxu0
    %v540 = vadd.f32 %v476, %v535
    %s541 = scalar_lea.vmem %s3, 48
    %v542 = vld [vmem:[%s541] sm:$0xf]
    %v543 = vld [vmem:[%s541 + $0x4] sm:$0xf]
    %v544 = vld [vmem:[%s541 + $0x8] sm:$0xf]
    %v545 = vld [vmem:[%s541 + $0xc] sm:$0xf]
    %v546 = vrot.slane %v363, 3
    %v552 = vunpack.c.l.b16 %v542
    %v553 = vunpack.c.l.b16 %v543
    %v554 = vunpack.c.l.b16 %v544
    %v555 = vunpack.c.l.b16 %v545
    %v556 = vpack.c.b16 %v553, %v552
    %v557 = vpack.c.b16 %v555, %v554
    %560 = vmatprep.subr.bf16.mxu0 0
    %561 = vmatpush1.bf16.xpose.msra.mxu0 %v556
    %562 = vmatprep.subr.bf16.mxu0 0
    %563 = vmatpush1.bf16.xpose.msra.mxu0 %v557
    %564 = vmatprep.subr.bf16.mxu0 0
    %565 = vmatpush1.bf16.xpose.msra.mxu0 0
    %566 = vmatprep.subr.bf16.mxu0 0
    %567 = vmatpush1.bf16.xpose.msra.mxu0 0
    %568 = vmatprep.subr.bf16.mxu0 0
    %569 = vmatpush1.bf16.xpose.msra.mxu0 0
    %570 = vmatprep.subr.bf16.mxu0 0
    %571 = vmatpush1.bf16.xpose.msra.mxu0 0
    %572 = vmatprep.subr.bf16.mxu0 0
    %573 = vmatpush1.bf16.xpose.msra.mxu0 0
    %574 = vmatprep.subr.bf16.mxu0 0
    %575 = vmatpush1.bf16.xpose.msra.mxu0 0
    %576 = vmatprep.subr.bf16.mxu0 0
    %577 = vmatpush1.bf16.xpose.msra.mxu0 0
    %578 = vmatprep.subr.bf16.mxu0 0
    %579 = vmatpush1.bf16.xpose.msra.mxu0 0
    %580 = vmatprep.subr.bf16.mxu0 0
    %581 = vmatpush1.bf16.xpose.msra.mxu0 0
    %582 = vmatprep.subr.bf16.mxu0 0
    %583 = vmatpush1.bf16.xpose.msra.mxu0 0
    %584 = vmatprep.subr.bf16.mxu0 0
    %585 = vmatpush1.bf16.xpose.msra.mxu0 0
    %586 = vmatprep.subr.bf16.mxu0 0
    %587 = vmatpush1.bf16.xpose.msra.mxu0 0
    %588 = vmatprep.subr.bf16.mxu0 0
    %589 = vmatpush1.bf16.xpose.msra.mxu0 0
    %590 = vmatprep.subr.bf16.mxu0 0
    %591 = vmatpush1.bf16.xpose.msra.mxu0 0
    %592 = vmatprep.mubr.bf16.mxu0 0
    %593 = vmatmul.mubr.bf16.gmra.mrb[0].mxu0 %v546
    %v594 = vpop.f32.mrb[0].mxu0
    %v595 = vadd.f32 0.0, %v594
    %v596 = vpop.f32.mrb[0].mxu0
    %v597 = vpop.f32.mrb[0].mxu0
    %v598 = vpop.f32.mrb[0].mxu0
    %599 = vdwg.mxu0
    %v600 = vadd.f32 %v540, %v595
    %s601 = scalar_lea.vmem %s3, 64
    %v602 = vld [vmem:[%s601] sm:$0xf]
    %v603 = vld [vmem:[%s601 + $0x4] sm:$0xf]
    %v604 = vld [vmem:[%s601 + $0x8] sm:$0xf]
    %v605 = vld [vmem:[%s601 + $0xc] sm:$0xf]
    %v606 = vrot.slane %v363, 4
    %v612 = vunpack.c.l.b16 %v602
    %v613 = vunpack.c.l.b16 %v603
    %v614 = vunpack.c.l.b16 %v604
    %v615 = vunpack.c.l.b16 %v605
    %v616 = vpack.c.b16 %v613, %v612
    %v617 = vpack.c.b16 %v615, %v614
    %620 = vmatprep.subr.bf16.mxu0 0
    %621 = vmatpush1.bf16.xpose.msra.mxu0 %v616
    %622 = vmatprep.subr.bf16.mxu0 0
    %623 = vmatpush1.bf16.xpose.msra.mxu0 %v617
    %624 = vmatprep.subr.bf16.mxu0 0
    %625 = vmatpush1.bf16.xpose.msra.mxu0 0
    %626 = vmatprep.subr.bf16.mxu0 0
    %627 = vmatpush1.bf16.xpose.msra.mxu0 0
    %628 = vmatprep.subr.bf16.mxu0 0
    %629 = vmatpush1.bf16.xpose.msra.mxu0 0
    %630 = vmatprep.subr.bf16.mxu0 0
    %631 = vmatpush1.bf16.xpose.msra.mxu0 0
    %632 = vmatprep.subr.bf16.mxu0 0
    %633 = vmatpush1.bf16.xpose.msra.mxu0 0
    %634 = vmatprep.subr.bf16.mxu0 0
    %635 = vmatpush1.bf16.xpose.msra.mxu0 0
    %636 = vmatprep.subr.bf16.mxu0 0
    %637 = vmatpush1.bf16.xpose.msra.mxu0 0
    %638 = vmatprep.subr.bf16.mxu0 0
    %639 = vmatpush1.bf16.xpose.msra.mxu0 0
    %640 = vmatprep.subr.bf16.mxu0 0
    %641 = vmatpush1.bf16.xpose.msra.mxu0 0
    %642 = vmatprep.subr.bf16.mxu0 0
    %643 = vmatpush1.bf16.xpose.msra.mxu0 0
    %644 = vmatprep.subr.bf16.mxu0 0
    %645 = vmatpush1.bf16.xpose.msra.mxu0 0
    %646 = vmatprep.subr.bf16.mxu0 0
    %647 = vmatpush1.bf16.xpose.msra.mxu0 0
    %648 = vmatprep.subr.bf16.mxu0 0
    %649 = vmatpush1.bf16.xpose.msra.mxu0 0
    %650 = vmatprep.subr.bf16.mxu0 0
    %651 = vmatpush1.bf16.xpose.msra.mxu0 0
    %652 = vmatprep.mubr.bf16.mxu0 0
    %653 = vmatmul.mubr.bf16.gmra.mrb[0].mxu0 %v606
    %v654 = vpop.f32.mrb[0].mxu0
    %v655 = vadd.f32 0.0, %v654
    %v656 = vpop.f32.mrb[0].mxu0
    %v657 = vpop.f32.mrb[0].mxu0
    %v658 = vpop.f32.mrb[0].mxu0
    %659 = vdwg.mxu0
    %v660 = vadd.f32 %v600, %v655
    %s661 = scalar_lea.vmem %s3, 80
    %v662 = vld [vmem:[%s661] sm:$0xf]
    %v663 = vld [vmem:[%s661 + $0x4] sm:$0xf]
    %v664 = vld [vmem:[%s661 + $0x8] sm:$0xf]
    %v665 = vld [vmem:[%s661 + $0xc] sm:$0xf]
    %v666 = vrot.slane %v363, 5
    %v672 = vunpack.c.l.b16 %v662
    %v673 = vunpack.c.l.b16 %v663
    %v674 = vunpack.c.l.b16 %v664
    %v675 = vunpack.c.l.b16 %v665
    %v676 = vpack.c.b16 %v673, %v672
    %v677 = vpack.c.b16 %v675, %v674
    %680 = vmatprep.subr.bf16.mxu0 0
    %681 = vmatpush1.bf16.xpose.msra.mxu0 %v676
    %682 = vmatprep.subr.bf16.mxu0 0
    %683 = vmatpush1.bf16.xpose.msra.mxu0 %v677
    %684 = vmatprep.subr.bf16.mxu0 0
    %685 = vmatpush1.bf16.xpose.msra.mxu0 0
    %686 = vmatprep.subr.bf16.mxu0 0
    %687 = vmatpush1.bf16.xpose.msra.mxu0 0
    %688 = vmatprep.subr.bf16.mxu0 0
    %689 = vmatpush1.bf16.xpose.msra.mxu0 0
    %690 = vmatprep.subr.bf16.mxu0 0
    %691 = vmatpush1.bf16.xpose.msra.mxu0 0
    %692 = vmatprep.subr.bf16.mxu0 0
    %693 = vmatpush1.bf16.xpose.msra.mxu0 0
    %694 = vmatprep.subr.bf16.mxu0 0
    %695 = vmatpush1.bf16.xpose.msra.mxu0 0
    %696 = vmatprep.subr.bf16.mxu0 0
    %697 = vmatpush1.bf16.xpose.msra.mxu0 0
    %698 = vmatprep.subr.bf16.mxu0 0
    %699 = vmatpush1.bf16.xpose.msra.mxu0 0
    %700 = vmatprep.subr.bf16.mxu0 0
    %701 = vmatpush1.bf16.xpose.msra.mxu0 0
    %702 = vmatprep.subr.bf16.mxu0 0
    %703 = vmatpush1.bf16.xpose.msra.mxu0 0
    %704 = vmatprep.subr.bf16.mxu0 0
    %705 = vmatpush1.bf16.xpose.msra.mxu0 0
    %706 = vmatprep.subr.bf16.mxu0 0
    %707 = vmatpush1.bf16.xpose.msra.mxu0 0
    %708 = vmatprep.subr.bf16.mxu0 0
    %709 = vmatpush1.bf16.xpose.msra.mxu0 0
    %710 = vmatprep.subr.bf16.mxu0 0
    %711 = vmatpush1.bf16.xpose.msra.mxu0 0
    %712 = vmatprep.mubr.bf16.mxu0 0
    %713 = vmatmul.mubr.bf16.gmra.mrb[0].mxu0 %v666
    %v714 = vpop.f32.mrb[0].mxu0
    %v715 = vadd.f32 0.0, %v714
    %v716 = vpop.f32.mrb[0].mxu0
    %v717 = vpop.f32.mrb[0].mxu0
    %v718 = vpop.f32.mrb[0].mxu0
    %719 = vdwg.mxu0
    %v720 = vadd.f32 %v660, %v715
    %s721 = scalar_lea.vmem %s3, 96
    %v722 = vld [vmem:[%s721] sm:$0xf]
    %v723 = vld [vmem:[%s721 + $0x4] sm:$0xf]
    %v724 = vld [vmem:[%s721 + $0x8] sm:$0xf]
    %v725 = vld [vmem:[%s721 + $0xc] sm:$0xf]
    %v726 = vrot.slane %v363, 6
    %v732 = vunpack.c.l.b16 %v722
    %v733 = vunpack.c.l.b16 %v723
    %v734 = vunpack.c.l.b16 %v724
    %v735 = vunpack.c.l.b16 %v725
    %v736 = vpack.c.b16 %v733, %v732
    %v737 = vpack.c.b16 %v735, %v734
    %740 = vmatprep.subr.bf16.mxu0 0
    %741 = vmatpush1.bf16.xpose.msra.mxu0 %v736
    %742 = vmatprep.subr.bf16.mxu0 0
    %743 = vmatpush1.bf16.xpose.msra.mxu0 %v737
    %744 = vmatprep.subr.bf16.mxu0 0
    %745 = vmatpush1.bf16.xpose.msra.mxu0 0
    %746 = vmatprep.subr.bf16.mxu0 0
    %747 = vmatpush1.bf16.xpose.msra.mxu0 0
    %748 = vmatprep.subr.bf16.mxu0 0
    %749 = vmatpush1.bf16.xpose.msra.mxu0 0
    %750 = vmatprep.subr.bf16.mxu0 0
    %751 = vmatpush1.bf16.xpose.msra.mxu0 0
    %752 = vmatprep.subr.bf16.mxu0 0
    %753 = vmatpush1.bf16.xpose.msra.mxu0 0
    %754 = vmatprep.subr.bf16.mxu0 0
    %755 = vmatpush1.bf16.xpose.msra.mxu0 0
    %756 = vmatprep.subr.bf16.mxu0 0
    %757 = vmatpush1.bf16.xpose.msra.mxu0 0
    %758 = vmatprep.subr.bf16.mxu0 0
    %759 = vmatpush1.bf16.xpose.msra.mxu0 0
    %760 = vmatprep.subr.bf16.mxu0 0
    %761 = vmatpush1.bf16.xpose.msra.mxu0 0
    %762 = vmatprep.subr.bf16.mxu0 0
    %763 = vmatpush1.bf16.xpose.msra.mxu0 0
    %764 = vmatprep.subr.bf16.mxu0 0
    %765 = vmatpush1.bf16.xpose.msra.mxu0 0
    %766 = vmatprep.subr.bf16.mxu0 0
    %767 = vmatpush1.bf16.xpose.msra.mxu0 0
    %768 = vmatprep.subr.bf16.mxu0 0
    %769 = vmatpush1.bf16.xpose.msra.mxu0 0
    %770 = vmatprep.subr.bf16.mxu0 0
    %771 = vmatpush1.bf16.xpose.msra.mxu0 0
    %772 = vmatprep.mubr.bf16.mxu0 0
    %773 = vmatmul.mubr.bf16.gmra.mrb[0].mxu0 %v726
    %v774 = vpop.f32.mrb[0].mxu0
    %v775 = vadd.f32 0.0, %v774
    %v776 = vpop.f32.mrb[0].mxu0
    %v777 = vpop.f32.mrb[0].mxu0
    %v778 = vpop.f32.mrb[0].mxu0
    %779 = vdwg.mxu0
    %v780 = vadd.f32 %v720, %v775
    %s781 = scalar_lea.vmem %s3, 112
    %v782 = vld [vmem:[%s781] sm:$0xf]
    %v783 = vld [vmem:[%s781 + $0x4] sm:$0xf]
    %v784 = vld [vmem:[%s781 + $0x8] sm:$0xf]
    %v785 = vld [vmem:[%s781 + $0xc] sm:$0xf]
    %v786 = vrot.slane %v363, 7
    %v792 = vunpack.c.l.b16 %v782
    %v793 = vunpack.c.l.b16 %v783
    %v794 = vunpack.c.l.b16 %v784
    %v795 = vunpack.c.l.b16 %v785
    %v796 = vpack.c.b16 %v793, %v792
    %v797 = vpack.c.b16 %v795, %v794
    %800 = vmatprep.subr.bf16.mxu0 0
    %801 = vmatpush1.bf16.xpose.msra.mxu0 %v796
    %802 = vmatprep.subr.bf16.mxu0 0
    %803 = vmatpush1.bf16.xpose.msra.mxu0 %v797
    %804 = vmatprep.subr.bf16.mxu0 0
    %805 = vmatpush1.bf16.xpose.msra.mxu0 0
    %806 = vmatprep.subr.bf16.mxu0 0
    %807 = vmatpush1.bf16.xpose.msra.mxu0 0
    %808 = vmatprep.subr.bf16.mxu0 0
    %809 = vmatpush1.bf16.xpose.msra.mxu0 0
    %810 = vmatprep.subr.bf16.mxu0 0
    %811 = vmatpush1.bf16.xpose.msra.mxu0 0
    %812 = vmatprep.subr.bf16.mxu0 0
    %813 = vmatpush1.bf16.xpose.msra.mxu0 0
    %814 = vmatprep.subr.bf16.mxu0 0
    %815 = vmatpush1.bf16.xpose.msra.mxu0 0
    %816 = vmatprep.subr.bf16.mxu0 0
    %817 = vmatpush1.bf16.xpose.msra.mxu0 0
    %818 = vmatprep.subr.bf16.mxu0 0
    %819 = vmatpush1.bf16.xpose.msra.mxu0 0
    %820 = vmatprep.subr.bf16.mxu0 0
    %821 = vmatpush1.bf16.xpose.msra.mxu0 0
    %822 = vmatprep.subr.bf16.mxu0 0
    %823 = vmatpush1.bf16.xpose.msra.mxu0 0
    %824 = vmatprep.subr.bf16.mxu0 0
    %825 = vmatpush1.bf16.xpose.msra.mxu0 0
    %826 = vmatprep.subr.bf16.mxu0 0
    %827 = vmatpush1.bf16.xpose.msra.mxu0 0
    %828 = vmatprep.subr.bf16.mxu0 0
    %829 = vmatpush1.bf16.xpose.msra.mxu0 0
    %830 = vmatprep.subr.bf16.mxu0 0
    %831 = vmatpush1.bf16.xpose.msra.mxu0 0
    %832 = vmatprep.mubr.bf16.mxu0 0
    %833 = vmatmul.mubr.bf16.gmra.mrb[0].mxu0 %v786
    %v834 = vpop.f32.mrb[0].mxu0
    %v835 = vadd.f32 0.0, %v834
    %v836 = vpop.f32.mrb[0].mxu0
    %v837 = vpop.f32.mrb[0].mxu0
    %v838 = vpop.f32.mrb[0].mxu0
    %839 = vdwg.mxu0
    %v840 = vadd.f32 %v780, %v835
    %s841 = scalar_lea.vmem %s3, 128
    %v842 = vld [vmem:[%s841] sm:$0xf]
    %v843 = vld [vmem:[%s841 + $0x4] sm:$0xf]
    %v844 = vld [vmem:[%s841 + $0x8] sm:$0xf]
    %v845 = vld [vmem:[%s841 + $0xc] sm:$0xf]
    %v850 = vunpack.c.l.b16 %v842
    %v851 = vunpack.c.l.b16 %v843
    %v852 = vunpack.c.l.b16 %v844
    %v853 = vunpack.c.l.b16 %v845
    %v854 = vpack.c.b16 %v851, %v850
    %v855 = vpack.c.b16 %v853, %v852
    %858 = vmatprep.subr.bf16.mxu0 0
    %859 = vmatpush1.bf16.xpose.msra.mxu0 %v854
    %860 = vmatprep.subr.bf16.mxu0 0
    %861 = vmatpush1.bf16.xpose.msra.mxu0 %v855
    %862 = vmatprep.subr.bf16.mxu0 0
    %863 = vmatpush1.bf16.xpose.msra.mxu0 0
    %864 = vmatprep.subr.bf16.mxu0 0
    %865 = vmatpush1.bf16.xpose.msra.mxu0 0
    %866 = vmatprep.subr.bf16.mxu0 0
    %867 = vmatpush1.bf16.xpose.msra.mxu0 0
    %868 = vmatprep.subr.bf16.mxu0 0
    %869 = vmatpush1.bf16.xpose.msra.mxu0 0
    %870 = vmatprep.subr.bf16.mxu0 0
    %871 = vmatpush1.bf16.xpose.msra.mxu0 0
    %872 = vmatprep.subr.bf16.mxu0 0
    %873 = vmatpush1.bf16.xpose.msra.mxu0 0
    %874 = vmatprep.subr.bf16.mxu0 0
    %875 = vmatpush1.bf16.xpose.msra.mxu0 0
    %876 = vmatprep.subr.bf16.mxu0 0
    %877 = vmatpush1.bf16.xpose.msra.mxu0 0
    %878 = vmatprep.subr.bf16.mxu0 0
    %879 = vmatpush1.bf16.xpose.msra.mxu0 0
    %880 = vmatprep.subr.bf16.mxu0 0
    %881 = vmatpush1.bf16.xpose.msra.mxu0 0
    %882 = vmatprep.subr.bf16.mxu0 0
    %883 = vmatpush1.bf16.xpose.msra.mxu0 0
    %884 = vmatprep.subr.bf16.mxu0 0
    %885 = vmatpush1.bf16.xpose.msra.mxu0 0
    %886 = vmatprep.subr.bf16.mxu0 0
    %887 = vmatpush1.bf16.xpose.msra.mxu0 0
    %888 = vmatprep.subr.bf16.mxu0 0
    %889 = vmatpush1.bf16.xpose.msra.mxu0 0
    %890 = vmatprep.mubr.bf16.mxu0 0
    %891 = vmatmul.mubr.bf16.gmra.mrb[0].mxu0 %v364
    %v892 = vpop.f32.mrb[0].mxu0
    %v893 = vadd.f32 0.0, %v892
    %v894 = vpop.f32.mrb[0].mxu0
    %v895 = vpop.f32.mrb[0].mxu0
    %v896 = vpop.f32.mrb[0].mxu0
    %897 = vdwg.mxu0
    %v898 = vadd.f32 %v840, %v893
    %s899 = scalar_lea.vmem %s3, 144
    %v900 = vld [vmem:[%s899] sm:$0xf]
    %v901 = vld [vmem:[%s899 + $0x4] sm:$0xf]
    %v902 = vld [vmem:[%s899 + $0x8] sm:$0xf]
    %v903 = vld [vmem:[%s899 + $0xc] sm:$0xf]
    %v905 = vrot.slane %v364, 1
    %v911 = vunpack.c.l.b16 %v900
    %v912 = vunpack.c.l.b16 %v901
    %v913 = vunpack.c.l.b16 %v902
    %v914 = vunpack.c.l.b16 %v903
    %v915 = vpack.c.b16 %v912, %v911
    %v916 = vpack.c.b16 %v914, %v913
    %919 = vmatprep.subr.bf16.mxu0 0
    %920 = vmatpush1.bf16.xpose.msra.mxu0 %v915
    %921 = vmatprep.subr.bf16.mxu0 0
    %922 = vmatpush1.bf16.xpose.msra.mxu0 %v916
    %923 = vmatprep.subr.bf16.mxu0 0
    %924 = vmatpush1.bf16.xpose.msra.mxu0 0
    %925 = vmatprep.subr.bf16.mxu0 0
    %926 = vmatpush1.bf16.xpose.msra.mxu0 0
    %927 = vmatprep.subr.bf16.mxu0 0
    %928 = vmatpush1.bf16.xpose.msra.mxu0 0
    %929 = vmatprep.subr.bf16.mxu0 0
    %930 = vmatpush1.bf16.xpose.msra.mxu0 0
    %931 = vmatprep.subr.bf16.mxu0 0
    %932 = vmatpush1.bf16.xpose.msra.mxu0 0
    %933 = vmatprep.subr.bf16.mxu0 0
    %934 = vmatpush1.bf16.xpose.msra.mxu0 0
    %935 = vmatprep.subr.bf16.mxu0 0
    %936 = vmatpush1.bf16.xpose.msra.mxu0 0
    %937 = vmatprep.subr.bf16.mxu0 0
    %938 = vmatpush1.bf16.xpose.msra.mxu0 0
    %939 = vmatprep.subr.bf16.mxu0 0
    %940 = vmatpush1.bf16.xpose.msra.mxu0 0
    %941 = vmatprep.subr.bf16.mxu0 0
    %942 = vmatpush1.bf16.xpose.msra.mxu0 0
    %943 = vmatprep.subr.bf16.mxu0 0
    %944 = vmatpush1.bf16.xpose.msra.mxu0 0
    %945 = vmatprep.subr.bf16.mxu0 0
    %946 = vmatpush1.bf16.xpose.msra.mxu0 0
    %947 = vmatprep.subr.bf16.mxu0 0
    %948 = vmatpush1.bf16.xpose.msra.mxu0 0
    %949 = vmatprep.subr.bf16.mxu0 0
    %950 = vmatpush1.bf16.xpose.msra.mxu0 0
    %951 = vmatprep.mubr.bf16.mxu0 0
    %952 = vmatmul.mubr.bf16.gmra.mrb[0].mxu0 %v905
    %v953 = vpop.f32.mrb[0].mxu0
    %v954 = vadd.f32 0.0, %v953
    %v955 = vpop.f32.mrb[0].mxu0
    %v956 = vpop.f32.mrb[0].mxu0
    %v957 = vpop.f32.mrb[0].mxu0
    %958 = vdwg.mxu0
    %v959 = vadd.f32 %v898, %v954
    %s960 = scalar_lea.vmem %s3, 160
    %v961 = vld [vmem:[%s960] sm:$0xf]
    %v962 = vld [vmem:[%s960 + $0x4] sm:$0xf]
    %v963 = vld [vmem:[%s960 + $0x8] sm:$0xf]
    %v964 = vld [vmem:[%s960 + $0xc] sm:$0xf]
    %v965 = vrot.slane %v364, 2
    %v971 = vunpack.c.l.b16 %v961
    %v972 = vunpack.c.l.b16 %v962
    %v973 = vunpack.c.l.b16 %v963
    %v974 = vunpack.c.l.b16 %v964
    %v975 = vpack.c.b16 %v972, %v971
    %v976 = vpack.c.b16 %v974, %v973
    %979 = vmatprep.subr.bf16.mxu0 0
    %980 = vmatpush1.bf16.xpose.msra.mxu0 %v975
    %981 = vmatprep.subr.bf16.mxu0 0
    %982 = vmatpush1.bf16.xpose.msra.mxu0 %v976
    %983 = vmatprep.subr.bf16.mxu0 0
    %984 = vmatpush1.bf16.xpose.msra.mxu0 0
    %985 = vmatprep.subr.bf16.mxu0 0
    %986 = vmatpush1.bf16.xpose.msra.mxu0 0
    %987 = vmatprep.subr.bf16.mxu0 0
    %988 = vmatpush1.bf16.xpose.msra.mxu0 0
    %989 = vmatprep.subr.bf16.mxu0 0
    %990 = vmatpush1.bf16.xpose.msra.mxu0 0
    %991 = vmatprep.subr.bf16.mxu0 0
    %992 = vmatpush1.bf16.xpose.msra.mxu0 0
    %993 = vmatprep.subr.bf16.mxu0 0
    %994 = vmatpush1.bf16.xpose.msra.mxu0 0
    %995 = vmatprep.subr.bf16.mxu0 0
    %996 = vmatpush1.bf16.xpose.msra.mxu0 0
    %997 = vmatprep.subr.bf16.mxu0 0
    %998 = vmatpush1.bf16.xpose.msra.mxu0 0
    %999 = vmatprep.subr.bf16.mxu0 0
    %1000 = vmatpush1.bf16.xpose.msra.mxu0 0
    %1001 = vmatprep.subr.bf16.mxu0 0
    %1002 = vmatpush1.bf16.xpose.msra.mxu0 0
    %1003 = vmatprep.subr.bf16.mxu0 0
    %1004 = vmatpush1.bf16.xpose.msra.mxu0 0
    %1005 = vmatprep.subr.bf16.mxu0 0
    %1006 = vmatpush1.bf16.xpose.msra.mxu0 0
    %1007 = vmatprep.subr.bf16.mxu0 0
    %1008 = vmatpush1.bf16.xpose.msra.mxu0 0
    %1009 = vmatprep.subr.bf16.mxu0 0
    %1010 = vmatpush1.bf16.xpose.msra.mxu0 0
    %1011 = vmatprep.mubr.bf16.mxu0 0
    %1012 = vmatmul.mubr.bf16.gmra.mrb[0].mxu0 %v965
    %v1013 = vpop.f32.mrb[0].mxu0
    %v1014 = vadd.f32 0.0, %v1013
    %v1015 = vpop.f32.mrb[0].mxu0
    %v1016 = vpop.f32.mrb[0].mxu0
    %v1017 = vpop.f32.mrb[0].mxu0
    %1018 = vdwg.mxu0
    %v1019 = vadd.f32 %v959, %v1014
    %s1020 = scalar_lea.vmem %s3, 176
    %v1021 = vld [vmem:[%s1020] sm:$0xf]
    %v1022 = vld [vmem:[%s1020 + $0x4] sm:$0xf]
    %v1023 = vld [vmem:[%s1020 + $0x8] sm:$0xf]
    %v1024 = vld [vmem:[%s1020 + $0xc] sm:$0xf]
    %v1025 = vrot.slane %v364, 3
    %v1031 = vunpack.c.l.b16 %v1021
    %v1032 = vunpack.c.l.b16 %v1022
    %v1033 = vunpack.c.l.b16 %v1023
    %v1034 = vunpack.c.l.b16 %v1024
    %v1035 = vpack.c.b16 %v1032, %v1031
    %v1036 = vpack.c.b16 %v1034, %v1033
    %1039 = vmatprep.subr.bf16.mxu0 0
    %1040 = vmatpush1.bf16.xpose.msra.mxu0 %v1035
    %1041 = vmatprep.subr.bf16.mxu0 0
    %1042 = vmatpush1.bf16.xpose.msra.mxu0 %v1036
    %1043 = vmatprep.subr.bf16.mxu0 0
    %1044 = vmatpush1.bf16.xpose.msra.mxu0 0
    %1045 = vmatprep.subr.bf16.mxu0 0
    %1046 = vmatpush1.bf16.xpose.msra.mxu0 0
    %1047 = vmatprep.subr.bf16.mxu0 0
    %1048 = vmatpush1.bf16.xpose.msra.mxu0 0
    %1049 = vmatprep.subr.bf16.mxu0 0
    %1050 = vmatpush1.bf16.xpose.msra.mxu0 0
    %1051 = vmatprep.subr.bf16.mxu0 0
    %1052 = vmatpush1.bf16.xpose.msra.mxu0 0
    %1053 = vmatprep.subr.bf16.mxu0 0
    %1054 = vmatpush1.bf16.xpose.msra.mxu0 0
    %1055 = vmatprep.subr.bf16.mxu0 0
    %1056 = vmatpush1.bf16.xpose.msra.mxu0 0
    %1057 = vmatprep.subr.bf16.mxu0 0
    %1058 = vmatpush1.bf16.xpose.msra.mxu0 0
    %1059 = vmatprep.subr.bf16.mxu0 0
    %1060 = vmatpush1.bf16.xpose.msra.mxu0 0
    %1061 = vmatprep.subr.bf16.mxu0 0
    %1062 = vmatpush1.bf16.xpose.msra.mxu0 0
    %1063 = vmatprep.subr.bf16.mxu0 0
    %1064 = vmatpush1.bf16.xpose.msra.mxu0 0
    %1065 = vmatprep.subr.bf16.mxu0 0
    %1066 = vmatpush1.bf16.xpose.msra.mxu0 0
    %1067 = vmatprep.subr.bf16.mxu0 0
    %1068 = vmatpush1.bf16.xpose.msra.mxu0 0
    %1069 = vmatprep.subr.bf16.mxu0 0
    %1070 = vmatpush1.bf16.xpose.msra.mxu0 0
    %1071 = vmatprep.mubr.bf16.mxu0 0
    %1072 = vmatmul.mubr.bf16.gmra.mrb[0].mxu0 %v1025
    %v1073 = vpop.f32.mrb[0].mxu0
    %v1074 = vadd.f32 0.0, %v1073
    %v1075 = vpop.f32.mrb[0].mxu0
    %v1076 = vpop.f32.mrb[0].mxu0
    %v1077 = vpop.f32.mrb[0].mxu0
    %1078 = vdwg.mxu0
    %v1079 = vadd.f32 %v1019, %v1074
    %s1080 = scalar_lea.vmem %s3, 192
    %v1081 = vld [vmem:[%s1080] sm:$0xf]
    %v1082 = vld [vmem:[%s1080 + $0x4] sm:$0xf]
    %v1083 = vld [vmem:[%s1080 + $0x8] sm:$0xf]
    %v1084 = vld [vmem:[%s1080 + $0xc] sm:$0xf]
    %v1085 = vrot.slane %v364, 4
    %v1091 = vunpack.c.l.b16 %v1081
    %v1092 = vunpack.c.l.b16 %v1082
    %v1093 = vunpack.c.l.b16 %v1083
    %v1094 = vunpack.c.l.b16 %v1084
    %v1095 = vpack.c.b16 %v1092, %v1091
    %v1096 = vpack.c.b16 %v1094, %v1093
    %1099 = vmatprep.subr.bf16.mxu0 0
    %1100 = vmatpush1.bf16.xpose.msra.mxu0 %v1095
    %1101 = vmatprep.subr.bf16.mxu0 0
    %1102 = vmatpush1.bf16.xpose.msra.mxu0 %v1096
    %1103 = vmatprep.subr.bf16.mxu0 0
    %1104 = vmatpush1.bf16.xpose.msra.mxu0 0
    %1105 = vmatprep.subr.bf16.mxu0 0
    %1106 = vmatpush1.bf16.xpose.msra.mxu0 0
    %1107 = vmatprep.subr.bf16.mxu0 0
    %1108 = vmatpush1.bf16.xpose.msra.mxu0 0
    %1109 = vmatprep.subr.bf16.mxu0 0
    %1110 = vmatpush1.bf16.xpose.msra.mxu0 0
    %1111 = vmatprep.subr.bf16.mxu0 0
    %1112 = vmatpush1.bf16.xpose.msra.mxu0 0
    %1113 = vmatprep.subr.bf16.mxu0 0
    %1114 = vmatpush1.bf16.xpose.msra.mxu0 0
    %1115 = vmatprep.subr.bf16.mxu0 0
    %1116 = vmatpush1.bf16.xpose.msra.mxu0 0
    %1117 = vmatprep.subr.bf16.mxu0 0
    %1118 = vmatpush1.bf16.xpose.msra.mxu0 0
    %1119 = vmatprep.subr.bf16.mxu0 0
    %1120 = vmatpush1.bf16.xpose.msra.mxu0 0
    %1121 = vmatprep.subr.bf16.mxu0 0
    %1122 = vmatpush1.bf16.xpose.msra.mxu0 0
    %1123 = vmatprep.subr.bf16.mxu0 0
    %1124 = vmatpush1.bf16.xpose.msra.mxu0 0
    %1125 = vmatprep.subr.bf16.mxu0 0
    %1126 = vmatpush1.bf16.xpose.msra.mxu0 0
    %1127 = vmatprep.subr.bf16.mxu0 0
    %1128 = vmatpush1.bf16.xpose.msra.mxu0 0
    %1129 = vmatprep.subr.bf16.mxu0 0
    %1130 = vmatpush1.bf16.xpose.msra.mxu0 0
    %1131 = vmatprep.mubr.bf16.mxu0 0
    %1132 = vmatmul.mubr.bf16.gmra.mrb[0].mxu0 %v1085
    %v1133 = vpop.f32.mrb[0].mxu0
    %v1134 = vadd.f32 0.0, %v1133
    %v1135 = vpop.f32.mrb[0].mxu0
    %v1136 = vpop.f32.mrb[0].mxu0
    %v1137 = vpop.f32.mrb[0].mxu0
    %1138 = vdwg.mxu0
    %v1139 = vadd.f32 %v1079, %v1134
    %s1140 = scalar_lea.vmem %s3, 208
    %v1141 = vld [vmem:[%s1140] sm:$0xf]
    %v1142 = vld [vmem:[%s1140 + $0x4] sm:$0xf]
    %v1143 = vld [vmem:[%s1140 + $0x8] sm:$0xf]
    %v1144 = vld [vmem:[%s1140 + $0xc] sm:$0xf]
    %v1145 = vrot.slane %v364, 5
    %v1151 = vunpack.c.l.b16 %v1141
    %v1152 = vunpack.c.l.b16 %v1142
    %v1153 = vunpack.c.l.b16 %v1143
    %v1154 = vunpack.c.l.b16 %v1144
    %v1155 = vpack.c.b16 %v1152, %v1151
    %v1156 = vpack.c.b16 %v1154, %v1153
    %1159 = vmatprep.subr.bf16.mxu0 0
    %1160 = vmatpush1.bf16.xpose.msra.mxu0 %v1155
    %1161 = vmatprep.subr.bf16.mxu0 0
    %1162 = vmatpush1.bf16.xpose.msra.mxu0 %v1156
    %1163 = vmatprep.subr.bf16.mxu0 0
    %1164 = vmatpush1.bf16.xpose.msra.mxu0 0
    %1165 = vmatprep.subr.bf16.mxu0 0
    %1166 = vmatpush1.bf16.xpose.msra.mxu0 0
    %1167 = vmatprep.subr.bf16.mxu0 0
    %1168 = vmatpush1.bf16.xpose.msra.mxu0 0
    %1169 = vmatprep.subr.bf16.mxu0 0
    %1170 = vmatpush1.bf16.xpose.msra.mxu0 0
    %1171 = vmatprep.subr.bf16.mxu0 0
    %1172 = vmatpush1.bf16.xpose.msra.mxu0 0
    %1173 = vmatprep.subr.bf16.mxu0 0
    %1174 = vmatpush1.bf16.xpose.msra.mxu0 0
    %1175 = vmatprep.subr.bf16.mxu0 0
    %1176 = vmatpush1.bf16.xpose.msra.mxu0 0
    %1177 = vmatprep.subr.bf16.mxu0 0
    %1178 = vmatpush1.bf16.xpose.msra.mxu0 0
    %1179 = vmatprep.subr.bf16.mxu0 0
    %1180 = vmatpush1.bf16.xpose.msra.mxu0 0
    %1181 = vmatprep.subr.bf16.mxu0 0
    %1182 = vmatpush1.bf16.xpose.msra.mxu0 0
    %1183 = vmatprep.subr.bf16.mxu0 0
    %1184 = vmatpush1.bf16.xpose.msra.mxu0 0
    %1185 = vmatprep.subr.bf16.mxu0 0
    %1186 = vmatpush1.bf16.xpose.msra.mxu0 0
    %1187 = vmatprep.subr.bf16.mxu0 0
    %1188 = vmatpush1.bf16.xpose.msra.mxu0 0
    %1189 = vmatprep.subr.bf16.mxu0 0
    %1190 = vmatpush1.bf16.xpose.msra.mxu0 0
    %1191 = vmatprep.mubr.bf16.mxu0 0
    %1192 = vmatmul.mubr.bf16.gmra.mrb[0].mxu0 %v1145
    %v1193 = vpop.f32.mrb[0].mxu0
    %v1194 = vadd.f32 0.0, %v1193
    %v1195 = vpop.f32.mrb[0].mxu0
    %v1196 = vpop.f32.mrb[0].mxu0
    %v1197 = vpop.f32.mrb[0].mxu0
    %1198 = vdwg.mxu0
    %v1199 = vadd.f32 %v1139, %v1194
    %s1200 = scalar_lea.vmem %s3, 224
    %v1201 = vld [vmem:[%s1200] sm:$0xf]
    %v1202 = vld [vmem:[%s1200 + $0x4] sm:$0xf]
    %v1203 = vld [vmem:[%s1200 + $0x8] sm:$0xf]
    %v1204 = vld [vmem:[%s1200 + $0xc] sm:$0xf]
    %v1205 = vrot.slane %v364, 6
    %v1211 = vunpack.c.l.b16 %v1201
    %v1212 = vunpack.c.l.b16 %v1202
    %v1213 = vunpack.c.l.b16 %v1203
    %v1214 = vunpack.c.l.b16 %v1204
    %v1215 = vpack.c.b16 %v1212, %v1211
    %v1216 = vpack.c.b16 %v1214, %v1213
    %1219 = vmatprep.subr.bf16.mxu0 0
    %1220 = vmatpush1.bf16.xpose.msra.mxu0 %v1215
    %1221 = vmatprep.subr.bf16.mxu0 0
    %1222 = vmatpush1.bf16.xpose.msra.mxu0 %v1216
    %1223 = vmatprep.subr.bf16.mxu0 0
    %1224 = vmatpush1.bf16.xpose.msra.mxu0 0
    %1225 = vmatprep.subr.bf16.mxu0 0
    %1226 = vmatpush1.bf16.xpose.msra.mxu0 0
    %1227 = vmatprep.subr.bf16.mxu0 0
    %1228 = vmatpush1.bf16.xpose.msra.mxu0 0
    %1229 = vmatprep.subr.bf16.mxu0 0
    %1230 = vmatpush1.bf16.xpose.msra.mxu0 0
    %1231 = vmatprep.subr.bf16.mxu0 0
    %1232 = vmatpush1.bf16.xpose.msra.mxu0 0
    %1233 = vmatprep.subr.bf16.mxu0 0
    %1234 = vmatpush1.bf16.xpose.msra.mxu0 0
    %1235 = vmatprep.subr.bf16.mxu0 0
    %1236 = vmatpush1.bf16.xpose.msra.mxu0 0
    %1237 = vmatprep.subr.bf16.mxu0 0
    %1238 = vmatpush1.bf16.xpose.msra.mxu0 0
    %1239 = vmatprep.subr.bf16.mxu0 0
    %1240 = vmatpush1.bf16.xpose.msra.mxu0 0
    %1241 = vmatprep.subr.bf16.mxu0 0
    %1242 = vmatpush1.bf16.xpose.msra.mxu0 0
    %1243 = vmatprep.subr.bf16.mxu0 0
    %1244 = vmatpush1.bf16.xpose.msra.mxu0 0
    %1245 = vmatprep.subr.bf16.mxu0 0
    %1246 = vmatpush1.bf16.xpose.msra.mxu0 0
    %1247 = vmatprep.subr.bf16.mxu0 0
    %1248 = vmatpush1.bf16.xpose.msra.mxu0 0
    %1249 = vmatprep.subr.bf16.mxu0 0
    %1250 = vmatpush1.bf16.xpose.msra.mxu0 0
    %1251 = vmatprep.mubr.bf16.mxu0 0
    %1252 = vmatmul.mubr.bf16.gmra.mrb[0].mxu0 %v1205
    %v1253 = vpop.f32.mrb[0].mxu0
    %v1254 = vadd.f32 0.0, %v1253
    %v1255 = vpop.f32.mrb[0].mxu0
    %v1256 = vpop.f32.mrb[0].mxu0
    %v1257 = vpop.f32.mrb[0].mxu0
    %1258 = vdwg.mxu0
    %v1259 = vadd.f32 %v1199, %v1254
    %s1260 = scalar_lea.vmem %s3, 240
    %v1261 = vld [vmem:[%s1260] sm:$0xf]
    %v1262 = vld [vmem:[%s1260 + $0x4] sm:$0xf]
    %v1263 = vld [vmem:[%s1260 + $0x8] sm:$0xf]
    %v1264 = vld [vmem:[%s1260 + $0xc] sm:$0xf]
    %v1265 = vrot.slane %v364, 7
    %v1271 = vunpack.c.l.b16 %v1261
    %v1272 = vunpack.c.l.b16 %v1262
    %v1273 = vunpack.c.l.b16 %v1263
    %v1274 = vunpack.c.l.b16 %v1264
    %v1275 = vpack.c.b16 %v1272, %v1271
    %v1276 = vpack.c.b16 %v1274, %v1273
    %1279 = vmatprep.subr.bf16.mxu0 0
    %1280 = vmatpush1.bf16.xpose.msra.mxu0 %v1275
    %1281 = vmatprep.subr.bf16.mxu0 0
    %1282 = vmatpush1.bf16.xpose.msra.mxu0 %v1276
    %1283 = vmatprep.subr.bf16.mxu0 0
    %1284 = vmatpush1.bf16.xpose.msra.mxu0 0
    %1285 = vmatprep.subr.bf16.mxu0 0
    %1286 = vmatpush1.bf16.xpose.msra.mxu0 0
    %1287 = vmatprep.subr.bf16.mxu0 0
    %1288 = vmatpush1.bf16.xpose.msra.mxu0 0
    %1289 = vmatprep.subr.bf16.mxu0 0
    %1290 = vmatpush1.bf16.xpose.msra.mxu0 0
    %1291 = vmatprep.subr.bf16.mxu0 0
    %1292 = vmatpush1.bf16.xpose.msra.mxu0 0
    %1293 = vmatprep.subr.bf16.mxu0 0
    %1294 = vmatpush1.bf16.xpose.msra.mxu0 0
    %1295 = vmatprep.subr.bf16.mxu0 0
    %1296 = vmatpush1.bf16.xpose.msra.mxu0 0
    %1297 = vmatprep.subr.bf16.mxu0 0
    %1298 = vmatpush1.bf16.xpose.msra.mxu0 0
    %1299 = vmatprep.subr.bf16.mxu0 0
    %1300 = vmatpush1.bf16.xpose.msra.mxu0 0
    %1301 = vmatprep.subr.bf16.mxu0 0
    %1302 = vmatpush1.bf16.xpose.msra.mxu0 0
    %1303 = vmatprep.subr.bf16.mxu0 0
    %1304 = vmatpush1.bf16.xpose.msra.mxu0 0
    %1305 = vmatprep.subr.bf16.mxu0 0
    %1306 = vmatpush1.bf16.xpose.msra.mxu0 0
    %1307 = vmatprep.subr.bf16.mxu0 0
    %1308 = vmatpush1.bf16.xpose.msra.mxu0 0
    %1309 = vmatprep.subr.bf16.mxu0 0
    %1310 = vmatpush1.bf16.xpose.msra.mxu0 0
    %1311 = vmatprep.mubr.bf16.mxu0 0
    %1312 = vmatmul.mubr.bf16.gmra.mrb[0].mxu0 %v1265
    %v1313 = vpop.f32.mrb[0].mxu0
    %v1314 = vadd.f32 0.0, %v1313
    %v1315 = vpop.f32.mrb[0].mxu0
    %v1316 = vpop.f32.mrb[0].mxu0
    %v1317 = vpop.f32.mrb[0].mxu0
    %1318 = vdwg.mxu0
    %v1319 = vadd.f32 %v1259, %v1314
    %v1320 = vld [vmem:[%s4] sm:$0x1]
    %v1322 = vlaneseq
    %v1323 = vshrl.u32 %v1322, 7
    %v1324 = vsub.s32 0, %v1323
    %v1325 = vrot.slane %v1320, %v1324
    %v1327 = vadd.f32 %v1319, %v1325
    %vm1328 = vcmask 254976
    %1329 = vst.msk [vmem:[#allocation2] sm:$0x3] %vm1328, %v1327
    // Predicated region
    $region22: #{nec_forward.1} parent=1 // pred_check
      _
    $region23: #{nec_forward.1} parent=1 // pred_check_branch
      %1331 = sbr.rel (0) target = $region25
    $region24: #{nec_forward.1} parent=1 // pred_region
      %s1333 = ssub.s32 32, 32
      %1334 = vsyncadd [#allocation3], %s1333
      %s1336 = sshll.u32 [#allocation2], 4
      %s1337 = int_to_ptr.vmem [resolvable:$true] %s1336
      %1339 = dma.vmem_to_hbm [thread:$0]  %s1337, 32, %s5, [#allocation3]
    $region25: #{nec_forward.1} parent=1 // pred_fallthru
      _
    // Predicated region
    $region26: #{nec_forward.1} parent=1 // pred_check
      _
    $region27: #{nec_forward.1} parent=1 // pred_check_branch
      %1341 = sbr.rel (0) target = $region29
    $region28: #{nec_forward.1} parent=1 // pred_region
      %1342 = dma.done [#allocation3], 32
    $region29: #{nec_forward.1} parent=1 // pred_fallthru
      _
    %1343 = vsyncpa [#allocation3], 1

</llo_original>
